<compile_context>
chip_gen: v5e
topology: v5e:2x2
jax: 0.10.0
libtpu: 0.0.40
codegen_flags: <defaults>
</compile_context>

<pallas_src>
import functools

import jax
import jax.numpy as jnp
from jax.experimental import pallas as pl
from jax.experimental.pallas import tpu as pltpu

_BN_EPS = 1e-5  # PyTorch BatchNorm2d default


# ------------------------------ fused kernel --------------------------------


def _basic_block_kernel(*refs, H1, W1, ce, cin, cout, KH, KW, has_proj, cdtype):
    """Entire BasicBlock for one batch image, fully resident in VMEM.

    refs:
      inputs : x_eff, w1m, s1, b1, w2m, s2, b2, [wsc, ssc, bsc]
      outputs: out
      scratch: xp  (halo-padded conv1 input)
               p1  (conv1 im2col patches)
               y1p (halo-padded conv1 output)
               p2  (conv2 im2col patches)
    """
    if has_proj:
        (x_ref, w1_ref, s1_ref, b1_ref, w2_ref, s2_ref, b2_ref,
         wsc_ref, ssc_ref, bsc_ref,
         out_ref, xp_ref, p1_ref, y1p_ref, p2_ref) = refs
    else:
        (x_ref, w1_ref, s1_ref, b1_ref, w2_ref, s2_ref, b2_ref,
         out_ref, xp_ref, p1_ref, y1p_ref, p2_ref) = refs

    f32 = jnp.float32

    # ---- conv1: halo padding inside VMEM (no HBM pad pass) ------------------
    xp_ref[...] = jnp.zeros_like(xp_ref)
    xp_ref[1:1 + H1, 1:1 + W1, :] = x_ref[0].astype(f32)

    # im2col staging: unit-stride window copies, then ONE MXU matmul with
    # K = KH*KW*ce instead of KH*KW tiny K=ce matmuls.
    for kh in range(KH):
        for kw in range(KW):
            c0 = (kh * KW + kw) * ce
            p1_ref[:, :, c0:c0 + ce] = xp_ref[kh:kh + H1, kw:kw + W1, :]
    p1 = p1_ref[...].reshape(H1 * W1, KH * KW * ce).astype(cdtype)
    y1 = jnp.dot(p1, w1_ref[...], preferred_element_type=f32)
    y1 = jnp.maximum(y1 * s1_ref[...] + b1_ref[...], 0.0)      # BN1 + ReLU (f32)

    # ---- conv2 (3x3, stride 1, pad 1): same scheme on the conv1 output ------
    y1p_ref[...] = jnp.zeros_like(y1p_ref)
    y1p_ref[1:1 + H1, 1:1 + W1, :] = y1.reshape(H1, W1, cout)
    for kh in range(3):
        for kw in range(3):
            c0 = (kh * 3 + kw) * cout
            p2_ref[:, :, c0:c0 + cout] = y1p_ref[kh:kh + H1, kw:kw + W1, :]
    p2 = p2_ref[...].reshape(H1 * W1, 9 * cout).astype(cdtype)
    y2 = jnp.dot(p2, w2_ref[...], preferred_element_type=f32)
    y2 = y2 * s2_ref[...] + b2_ref[...]                         # BN2 (f32)

    # ---- shortcut ------------------------------------------------------------
    if has_proj:
        # 1x1 strided projection: with the space-to-depth layout the strided
        # samples x[s*i, s*j, :] are exactly the first `cin` channels of x_eff.
        sc_in = x_ref[0][:, :, 0:cin].reshape(H1 * W1, cin).astype(cdtype)
        sc = jnp.dot(sc_in, wsc_ref[...], preferred_element_type=f32)
        sc = sc * ssc_ref[...] + bsc_ref[...]
    else:
        sc = x_ref[0].reshape(H1 * W1, cout).astype(f32)

    # ---- residual add + final ReLU + store -----------------------------------
    out = jnp.maximum(y2 + sc, 0.0)
    out_ref[0] = out.reshape(H1, W1, cout).astype(out_ref.dtype)


# ------------------------------- host helpers --------------------------------


def _fold_bn(gamma, beta, mean, var):
    scale = gamma / jnp.sqrt(var + _BN_EPS)
    bias = beta - mean * scale
    return (scale.reshape(1, -1).astype(jnp.float32),
            bias.reshape(1, -1).astype(jnp.float32))


def _space_to_depth_weight(w_hwio, stride):
    """Rewrite a (3,3,cin,cout) stride-s pad-1 conv weight as the equivalent
    (2,2,s*s*cin,cout) stride-1 conv weight over the space-to-depth input
    (which carries a top/left halo pad of 1)."""
    kh3, kw3, cin, cout = w_hwio.shape
    assert kh3 == 3 and kw3 == 3
    s = stride
    w_eff = jnp.zeros((2, 2, s * s * cin, cout), w_hwio.dtype)

    def tap(k):  # kernel index k in {0,1,2} -> (2x2 window offset r, parity a)
        return (0, s - 1) if k == 0 else (1, k - 1)

    for kh in range(3):
        r, a = tap(kh)
        for kw in range(3):
            r2, b = tap(kw)
            c0 = (a * s + b) * cin
            w_eff = w_eff.at[r, r2, c0:c0 + cin, :].set(w_hwio[kh, kw])
    return w_eff


# --------------------------------- module ------------------------------------


class BasicBlockPallas:
    expansion = 1

    def __init__(self, in_channels, out_channels, stride=1, *,
                 key, compute_dtype=jnp.bfloat16):
        self.in_channels = in_channels
        self.out_channels = out_channels
        self.stride = stride
        self.compute_dtype = compute_dtype
        k = jax.random.split(key, 6)

        def conv_w(kk, kh, kw, cin, cout):
            fan_in = cin * kh * kw
            std = (2.0 / fan_in) ** 0.5
            return std * jax.random.normal(kk, (kh, kw, cin, cout), jnp.float32)

        def bn_params(kk, c):
            k0, k1, k2, k3 = jax.random.split(kk, 4)
            gamma = 1.0 + 0.1 * jax.random.normal(k0, (c,), jnp.float32)
            beta = 0.1 * jax.random.normal(k1, (c,), jnp.float32)
            mean = 0.1 * jax.random.normal(k2, (c,), jnp.float32)
            var = jax.random.uniform(k3, (c,), jnp.float32,
                                     minval=0.5, maxval=1.5)
            return gamma, beta, mean, var

        self.w1 = conv_w(k[0], 3, 3, in_channels, out_channels)
        self.bn1 = bn_params(k[1], out_channels)
        self.w2 = conv_w(k[2], 3, 3, out_channels, out_channels)
        self.bn2 = bn_params(k[3], out_channels)
        self.has_projection = (stride != 1 or
                               in_channels != out_channels * self.expansion)
        if self.has_projection:
            self.w_sc = conv_w(k[4], 1, 1, in_channels,
                               out_channels * self.expansion)
            self.bn_sc = bn_params(k[5], out_channels * self.expansion)

    def __call__(self, x_nchw):
        cdtype = self.compute_dtype
        x = jnp.transpose(x_nchw, (0, 2, 3, 1))           # NCHW -> NHWC (boundary)
        N, H, W, cin = x.shape
        cout = self.out_channels
        s = self.stride

        if s == 1:
            H1, W1, ce, KH, KW = H, W, cin, 3, 3
            x_eff = x
            w1_eff = self.w1
        else:
            # TODO(synk): spatial sizes not divisible by the stride are unsupported.
            assert H % s == 0 and W % s == 0
            H1, W1 = H // s, W // s
            ce, KH, KW = s * s * cin, 2, 2
            # Space-to-depth (single XLA rearrange, fuses with the transpose above):
            # strided access moves out of the kernel, and conv1 does no wasted work.
            x_eff = (x.reshape(N, H1, s, W1, s, cin)
                       .transpose(0, 1, 3, 2, 4, 5)
                       .reshape(N, H1, W1, ce))
            w1_eff = _space_to_depth_weight(self.w1, s)

        # im2col weight matrices + folded BN affines at the kernel boundary.
        w1m = w1_eff.reshape(KH * KW * ce, cout).astype(cdtype)
        w2m = self.w2.reshape(9 * cout, cout).astype(cdtype)
        s1, b1 = _fold_bn(*self.bn1)
        s2, b2 = _fold_bn(*self.bn2)
        x_eff = x_eff.astype(cdtype)

        operands = [x_eff, w1m, s1, b1, w2m, s2, b2]
        in_specs = [
            pl.BlockSpec((1, H1, W1, ce), lambda n: (n, 0, 0, 0)),
            pl.BlockSpec((KH * KW * ce, cout), lambda n: (0, 0)),
            pl.BlockSpec((1, cout), lambda n: (0, 0)),
            pl.BlockSpec((1, cout), lambda n: (0, 0)),
            pl.BlockSpec((9 * cout, cout), lambda n: (0, 0)),
            pl.BlockSpec((1, cout), lambda n: (0, 0)),
            pl.BlockSpec((1, cout), lambda n: (0, 0)),
        ]
        if self.has_projection:
            ssc, bsc = _fold_bn(*self.bn_sc)
            wscm = self.w_sc[0, 0].astype(cdtype)         # (cin, cout)
            operands += [wscm, ssc, bsc]
            in_specs += [
                pl.BlockSpec((cin, cout), lambda n: (0, 0)),
                pl.BlockSpec((1, cout), lambda n: (0, 0)),
                pl.BlockSpec((1, cout), lambda n: (0, 0)),
            ]

        kern = functools.partial(
            _basic_block_kernel, H1=H1, W1=W1, ce=ce, cin=cin, cout=cout,
            KH=KH, KW=KW, has_proj=self.has_projection, cdtype=cdtype)

        out = pl.pallas_call(
            kern,
            out_shape=jax.ShapeDtypeStruct((N, H1, W1, cout), jnp.float32),
            grid=(N,),
            in_specs=in_specs,
            out_specs=pl.BlockSpec((1, H1, W1, cout), lambda n: (n, 0, 0, 0)),
            scratch_shapes=[
                pltpu.VMEM((H1 + KH - 1, W1 + KW - 1, ce), jnp.float32),  # xp
                pltpu.VMEM((H1, W1, KH * KW * ce), jnp.float32),          # p1
                pltpu.VMEM((H1 + 2, W1 + 2, cout), jnp.float32),          # y1p
                pltpu.VMEM((H1, W1, 9 * cout), jnp.float32),              # p2
            ],
            compiler_params=pltpu.CompilerParams(
                dimension_semantics=("parallel",)),
        )(*operands)

        return jnp.transpose(out, (0, 3, 1, 2))           # NHWC -> NCHW


# ----------------------------- pure-JAX reference -----------------------------


def reference_forward(block, x_nchw):
    def conv(x, w_hwio, stride, pad):
        return jax.lax.conv_general_dilated(
            x, w_hwio, (stride, stride), ((pad, pad), (pad, pad)),
            dimension_numbers=("NCHW", "HWIO", "NCHW"),
            precision=jax.lax.Precision.HIGHEST)

    def bn(x, params):
        gamma, beta, mean, var = params
        inv = gamma / jnp.sqrt(var + _BN_EPS)
        return (x * inv[None, :, None, None]
                + (beta - mean * inv)[None, :, None, None])

    out = jax.nn.relu(bn(conv(x_nchw, block.w1, block.stride, 1), block.bn1))
    out = bn(conv(out, block.w2, 1, 1), block.bn2)
    if block.has_projection:
        sc = bn(conv(x_nchw, block.w_sc, block.stride, 0), block.bn_sc)
    else:
        sc = x_nchw
    return jax.nn.relu(out + sc)


# ----------------------------------- main -------------------------------------


if __name__ == "__main__":
    key = jax.random.PRNGKey(0)
    kx, kp, kp2 = jax.random.split(key, 3)

    # Case 1: stride-2 downsampling block with a 1x1 projection shortcut.
    x = jax.random.normal(kx, (2, 4, 16, 16), jnp.float32)

    block_f32 = BasicBlockPallas(4, 8, stride=2, key=kp,
                                 compute_dtype=jnp.float32)
    out = jax.block_until_ready(block_f32(x))
    assert out.shape == (2, 8, 8, 8), out.shape
    ref = reference_forward(block_f32, x)
    err = float(jnp.max(jnp.abs(out - ref)))
    assert err < 2e-3, f"f32 stride-2 max abs err {err}"

    # Same block, bf16 activations/weights on the MXU (f32 accumulation).
    block_bf16 = BasicBlockPallas(4, 8, stride=2, key=kp,
                                  compute_dtype=jnp.bfloat16)
    out_bf16 = jax.block_until_ready(block_bf16(x))
    err_bf16 = float(jnp.max(jnp.abs(out_bf16 - ref)))
    assert err_bf16 < 3e-1, f"bf16 stride-2 max abs err {err_bf16}"

    # Case 2: stride-1 block with identity shortcut.
    x2 = jax.random.normal(kx, (2, 8, 8, 8), jnp.float32)
    block_id = BasicBlockPallas(8, 8, stride=1, key=kp2,
                                compute_dtype=jnp.float32)
    out2 = jax.block_until_ready(block_id(x2))
    assert out2.shape == (2, 8, 8, 8), out2.shape
    ref2 = reference_forward(block_id, x2)
    err2 = float(jnp.max(jnp.abs(out2 - ref2)))
    assert err2 < 2e-3, f"f32 stride-1 max abs err {err2}"

    print("KERNEL_OK")
</pallas_src>

<mosaic_0001>
module attributes {stable_mosaic.version = 11 : i64} {
  func.func @_basic_block_kernel(%arg0: i32, %arg1: memref<1x8x8x16xf32, #tpu.memory_space<vmem>>, %arg2: memref<64x8xf32, #tpu.memory_space<vmem>>, %arg3: memref<1x8xf32, #tpu.memory_space<vmem>>, %arg4: memref<1x8xf32, #tpu.memory_space<vmem>>, %arg5: memref<72x8xf32, #tpu.memory_space<vmem>>, %arg6: memref<1x8xf32, #tpu.memory_space<vmem>>, %arg7: memref<1x8xf32, #tpu.memory_space<vmem>>, %arg8: memref<4x8xf32, #tpu.memory_space<vmem>>, %arg9: memref<1x8xf32, #tpu.memory_space<vmem>>, %arg10: memref<1x8xf32, #tpu.memory_space<vmem>>, %arg11: memref<1x8x8x8xf32, #tpu.memory_space<vmem>>, %arg12: memref<9x9x16xf32, #tpu.memory_space<vmem>>, %arg13: memref<8x8x64xf32, #tpu.memory_space<vmem>>, %arg14: memref<10x10x8xf32, #tpu.memory_space<vmem>>, %arg15: memref<8x8x72xf32, #tpu.memory_space<vmem>>) attributes {dimension_semantics = [#tpu.dimension_semantics<parallel>], iteration_bounds = array<i64: 2>, scalar_prefetch = 0 : i64, scratch_operands = 4 : i64, tpu.core_type = #tpu.core_type<tc>, window_params = [{transform_indices = @transform_0, window_bounds = array<i64: 1, 8, 8, 16>}, {pipeline_mode = #tpu.pipeline_mode<synchronous>, transform_indices = @transform_1, window_bounds = array<i64: 64, 8>}, {pipeline_mode = #tpu.pipeline_mode<synchronous>, transform_indices = @transform_2, window_bounds = array<i64: 1, 8>}, {pipeline_mode = #tpu.pipeline_mode<synchronous>, transform_indices = @transform_3, window_bounds = array<i64: 1, 8>}, {pipeline_mode = #tpu.pipeline_mode<synchronous>, transform_indices = @transform_4, window_bounds = array<i64: 72, 8>}, {pipeline_mode = #tpu.pipeline_mode<synchronous>, transform_indices = @transform_5, window_bounds = array<i64: 1, 8>}, {pipeline_mode = #tpu.pipeline_mode<synchronous>, transform_indices = @transform_6, window_bounds = array<i64: 1, 8>}, {pipeline_mode = #tpu.pipeline_mode<synchronous>, transform_indices = @transform_7, window_bounds = array<i64: 4, 8>}, {pipeline_mode = #tpu.pipeline_mode<synchronous>, transform_indices = @transform_8, window_bounds = array<i64: 1, 8>}, {pipeline_mode = #tpu.pipeline_mode<synchronous>, transform_indices = @transform_9, window_bounds = array<i64: 1, 8>}, {transform_indices = @transform_10, window_bounds = array<i64: 1, 8, 8, 8>}]} {
    %cst = arith.constant 0.000000e+00 : f32
    %0 = vector.broadcast %cst : f32 to vector<9x9x16xf32>
    %c0 = arith.constant 0 : index
    %c0_0 = arith.constant 0 : index
    %c0_1 = arith.constant 0 : index
    %1 = vector.load %arg12[%c0, %c0_0, %c0_1] : memref<9x9x16xf32, #tpu.memory_space<vmem>>, vector<9x9x16xf32>
    tpu.vector_store %arg12[%c0, %c0_0, %c0_1], %0 {strides = array<i32>} : memref<9x9x16xf32, #tpu.memory_space<vmem>>, vector<9x9x16xf32>,
    %c0_2 = arith.constant 0 : index
    %c0_3 = arith.constant 0 : index
    %c0_4 = arith.constant 0 : index
    %c0_5 = arith.constant 0 : index
    %2 = vector.load %arg1[%c0_2, %c0_3, %c0_4, %c0_5] : memref<1x8x8x16xf32, #tpu.memory_space<vmem>>, vector<1x8x8x16xf32>
    %3 = vector.shape_cast %2 : vector<1x8x8x16xf32> to vector<8x8x16xf32>
    %c1 = arith.constant 1 : index
    %c1_6 = arith.constant 1 : index
    %c0_7 = arith.constant 0 : index
    %4 = vector.load %arg12[%c1, %c1_6, %c0_7] : memref<9x9x16xf32, #tpu.memory_space<vmem>>, vector<8x8x16xf32>
    tpu.vector_store %arg12[%c1, %c1_6, %c0_7], %3 {strides = array<i32>} : memref<9x9x16xf32, #tpu.memory_space<vmem>>, vector<8x8x16xf32>,
    %c0_8 = arith.constant 0 : index
    %c0_9 = arith.constant 0 : index
    %c0_10 = arith.constant 0 : index
    %5 = vector.load %arg12[%c0_8, %c0_9, %c0_10] : memref<9x9x16xf32, #tpu.memory_space<vmem>>, vector<8x8x16xf32>
    %c0_11 = arith.constant 0 : index
    %c0_12 = arith.constant 0 : index
    %c0_13 = arith.constant 0 : index
    %6 = vector.load %arg13[%c0_11, %c0_12, %c0_13] : memref<8x8x64xf32, #tpu.memory_space<vmem>>, vector<8x8x16xf32>
    tpu.vector_store %arg13[%c0_11, %c0_12, %c0_13], %5 {strides = array<i32>} : memref<8x8x64xf32, #tpu.memory_space<vmem>>, vector<8x8x16xf32>,
    %c0_14 = arith.constant 0 : index
    %c1_15 = arith.constant 1 : index
    %c0_16 = arith.constant 0 : index
    %7 = vector.load %arg12[%c0_14, %c1_15, %c0_16] : memref<9x9x16xf32, #tpu.memory_space<vmem>>, vector<8x8x16xf32>
    %c0_17 = arith.constant 0 : index
    %c0_18 = arith.constant 0 : index
    %c16 = arith.constant 16 : index
    %8 = vector.load %arg13[%c0_17, %c0_18, %c16] : memref<8x8x64xf32, #tpu.memory_space<vmem>>, vector<8x8x16xf32>
    tpu.vector_store %arg13[%c0_17, %c0_18, %c16], %7 {strides = array<i32>} : memref<8x8x64xf32, #tpu.memory_space<vmem>>, vector<8x8x16xf32>,
    %c1_19 = arith.constant 1 : index
    %c0_20 = arith.constant 0 : index
    %c0_21 = arith.constant 0 : index
    %9 = vector.load %arg12[%c1_19, %c0_20, %c0_21] : memref<9x9x16xf32, #tpu.memory_space<vmem>>, vector<8x8x16xf32>
    %c0_22 = arith.constant 0 : index
    %c0_23 = arith.constant 0 : index
    %c32 = arith.constant 32 : index
    %10 = vector.load %arg13[%c0_22, %c0_23, %c32] : memref<8x8x64xf32, #tpu.memory_space<vmem>>, vector<8x8x16xf32>
    tpu.vector_store %arg13[%c0_22, %c0_23, %c32], %9 {strides = array<i32>} : memref<8x8x64xf32, #tpu.memory_space<vmem>>, vector<8x8x16xf32>,
    %c1_24 = arith.constant 1 : index
    %c1_25 = arith.constant 1 : index
    %c0_26 = arith.constant 0 : index
    %11 = vector.load %arg12[%c1_24, %c1_25, %c0_26] : memref<9x9x16xf32, #tpu.memory_space<vmem>>, vector<8x8x16xf32>
    %c0_27 = arith.constant 0 : index
    %c0_28 = arith.constant 0 : index
    %c48 = arith.constant 48 : index
    %12 = vector.load %arg13[%c0_27, %c0_28, %c48] : memref<8x8x64xf32, #tpu.memory_space<vmem>>, vector<8x8x16xf32>
    tpu.vector_store %arg13[%c0_27, %c0_28, %c48], %11 {strides = array<i32>} : memref<8x8x64xf32, #tpu.memory_space<vmem>>, vector<8x8x16xf32>,
    %c0_29 = arith.constant 0 : index
    %c0_30 = arith.constant 0 : index
    %c0_31 = arith.constant 0 : index
    %13 = vector.load %arg13[%c0_29, %c0_30, %c0_31] : memref<8x8x64xf32, #tpu.memory_space<vmem>>, vector<8x8x64xf32>
    %14 = vector.shape_cast %13 : vector<8x8x64xf32> to vector<64x64xf32>
    %c0_32 = arith.constant 0 : index
    %c0_33 = arith.constant 0 : index
    %15 = vector.load %arg2[%c0_32, %c0_33] : memref<64x8xf32, #tpu.memory_space<vmem>>, vector<64x8xf32>
    %cst_34 = arith.constant dense<0.000000e+00> : vector<64x8xf32>
    %16 = tpu.matmul %14, %15, %cst_34 {dimension_numbers = #tpu.dot_dimension_numbers<[1], [0], [0], [1], [0, 0, 1, 1], [], []>} : vector<64x64xf32>, vector<64x8xf32>, vector<64x8xf32> -> vector<64x8xf32>
    %c0_35 = arith.constant 0 : index
    %c0_36 = arith.constant 0 : index
    %17 = vector.load %arg3[%c0_35, %c0_36] : memref<1x8xf32, #tpu.memory_space<vmem>>, vector<1x8xf32>
    %18 = vector.broadcast %17 : vector<1x8xf32> to vector<64x8xf32>
    %19 = arith.mulf %16, %18 : vector<64x8xf32>
    %c0_37 = arith.constant 0 : index
    %c0_38 = arith.constant 0 : index
    %20 = vector.load %arg4[%c0_37, %c0_38] : memref<1x8xf32, #tpu.memory_space<vmem>>, vector<1x8xf32>
    %21 = vector.broadcast %20 : vector<1x8xf32> to vector<64x8xf32>
    %22 = arith.addf %19, %21 : vector<64x8xf32>
    %cst_39 = arith.constant 0.000000e+00 : f32
    %23 = vector.broadcast %cst_39 : f32 to vector<64x8xf32>
    %24 = arith.maximumf %22, %23 : vector<64x8xf32>
    %cst_40 = arith.constant 0.000000e+00 : f32
    %25 = vector.broadcast %cst_40 : f32 to vector<10x10x8xf32>
    %c0_41 = arith.constant 0 : index
    %c0_42 = arith.constant 0 : index
    %c0_43 = arith.constant 0 : index
    %26 = vector.load %arg14[%c0_41, %c0_42, %c0_43] : memref<10x10x8xf32, #tpu.memory_space<vmem>>, vector<10x10x8xf32>
    tpu.vector_store %arg14[%c0_41, %c0_42, %c0_43], %25 {strides = array<i32>} : memref<10x10x8xf32, #tpu.memory_space<vmem>>, vector<10x10x8xf32>,
    %27 = vector.shape_cast %24 : vector<64x8xf32> to vector<8x8x8xf32>
    %c1_44 = arith.constant 1 : index
    %c1_45 = arith.constant 1 : index
    %c0_46 = arith.constant 0 : index
    %28 = vector.load %arg14[%c1_44, %c1_45, %c0_46] : memref<10x10x8xf32, #tpu.memory_space<vmem>>, vector<8x8x8xf32>
    tpu.vector_store %arg14[%c1_44, %c1_45, %c0_46], %27 {strides = array<i32>} : memref<10x10x8xf32, #tpu.memory_space<vmem>>, vector<8x8x8xf32>,
    %c0_47 = arith.constant 0 : index
    %c0_48 = arith.constant 0 : index
    %c0_49 = arith.constant 0 : index
    %29 = vector.load %arg14[%c0_47, %c0_48, %c0_49] : memref<10x10x8xf32, #tpu.memory_space<vmem>>, vector<8x8x8xf32>
    %c0_50 = arith.constant 0 : index
    %c0_51 = arith.constant 0 : index
    %c0_52 = arith.constant 0 : index
    %30 = vector.load %arg15[%c0_50, %c0_51, %c0_52] : memref<8x8x72xf32, #tpu.memory_space<vmem>>, vector<8x8x8xf32>
    tpu.vector_store %arg15[%c0_50, %c0_51, %c0_52], %29 {strides = array<i32>} : memref<8x8x72xf32, #tpu.memory_space<vmem>>, vector<8x8x8xf32>,
    %c0_53 = arith.constant 0 : index
    %c1_54 = arith.constant 1 : index
    %c0_55 = arith.constant 0 : index
    %31 = vector.load %arg14[%c0_53, %c1_54, %c0_55] : memref<10x10x8xf32, #tpu.memory_space<vmem>>, vector<8x8x8xf32>
    %c0_56 = arith.constant 0 : index
    %c0_57 = arith.constant 0 : index
    %c8 = arith.constant 8 : index
    %32 = vector.load %arg15[%c0_56, %c0_57, %c8] : memref<8x8x72xf32, #tpu.memory_space<vmem>>, vector<8x8x8xf32>
    tpu.vector_store %arg15[%c0_56, %c0_57, %c8], %31 {strides = array<i32>} : memref<8x8x72xf32, #tpu.memory_space<vmem>>, vector<8x8x8xf32>,
    %c0_58 = arith.constant 0 : index
    %c2 = arith.constant 2 : index
    %c0_59 = arith.constant 0 : index
    %33 = vector.load %arg14[%c0_58, %c2, %c0_59] : memref<10x10x8xf32, #tpu.memory_space<vmem>>, vector<8x8x8xf32>
    %c0_60 = arith.constant 0 : index
    %c0_61 = arith.constant 0 : index
    %c16_62 = arith.constant 16 : index
    %34 = vector.load %arg15[%c0_60, %c0_61, %c16_62] : memref<8x8x72xf32, #tpu.memory_space<vmem>>, vector<8x8x8xf32>
    tpu.vector_store %arg15[%c0_60, %c0_61, %c16_62], %33 {strides = array<i32>} : memref<8x8x72xf32, #tpu.memory_space<vmem>>, vector<8x8x8xf32>,
    %c1_63 = arith.constant 1 : index
    %c0_64 = arith.constant 0 : index
    %c0_65 = arith.constant 0 : index
    %35 = vector.load %arg14[%c1_63, %c0_64, %c0_65] : memref<10x10x8xf32, #tpu.memory_space<vmem>>, vector<8x8x8xf32>
    %c0_66 = arith.constant 0 : index
    %c0_67 = arith.constant 0 : index
    %c24 = arith.constant 24 : index
    %36 = vector.load %arg15[%c0_66, %c0_67, %c24] : memref<8x8x72xf32, #tpu.memory_space<vmem>>, vector<8x8x8xf32>
    tpu.vector_store %arg15[%c0_66, %c0_67, %c24], %35 {strides = array<i32>} : memref<8x8x72xf32, #tpu.memory_space<vmem>>, vector<8x8x8xf32>,
    %c1_68 = arith.constant 1 : index
    %c1_69 = arith.constant 1 : index
    %c0_70 = arith.constant 0 : index
    %37 = vector.load %arg14[%c1_68, %c1_69, %c0_70] : memref<10x10x8xf32, #tpu.memory_space<vmem>>, vector<8x8x8xf32>
    %c0_71 = arith.constant 0 : index
    %c0_72 = arith.constant 0 : index
    %c32_73 = arith.constant 32 : index
    %38 = vector.load %arg15[%c0_71, %c0_72, %c32_73] : memref<8x8x72xf32, #tpu.memory_space<vmem>>, vector<8x8x8xf32>
    tpu.vector_store %arg15[%c0_71, %c0_72, %c32_73], %37 {strides = array<i32>} : memref<8x8x72xf32, #tpu.memory_space<vmem>>, vector<8x8x8xf32>,
    %c1_74 = arith.constant 1 : index
    %c2_75 = arith.constant 2 : index
    %c0_76 = arith.constant 0 : index
    %39 = vector.load %arg14[%c1_74, %c2_75, %c0_76] : memref<10x10x8xf32, #tpu.memory_space<vmem>>, vector<8x8x8xf32>
    %c0_77 = arith.constant 0 : index
    %c0_78 = arith.constant 0 : index
    %c40 = arith.constant 40 : index
    %40 = vector.load %arg15[%c0_77, %c0_78, %c40] : memref<8x8x72xf32, #tpu.memory_space<vmem>>, vector<8x8x8xf32>
    tpu.vector_store %arg15[%c0_77, %c0_78, %c40], %39 {strides = array<i32>} : memref<8x8x72xf32, #tpu.memory_space<vmem>>, vector<8x8x8xf32>,
    %c2_79 = arith.constant 2 : index
    %c0_80 = arith.constant 0 : index
    %c0_81 = arith.constant 0 : index
    %41 = vector.load %arg14[%c2_79, %c0_80, %c0_81] : memref<10x10x8xf32, #tpu.memory_space<vmem>>, vector<8x8x8xf32>
    %c0_82 = arith.constant 0 : index
    %c0_83 = arith.constant 0 : index
    %c48_84 = arith.constant 48 : index
    %42 = vector.load %arg15[%c0_82, %c0_83, %c48_84] : memref<8x8x72xf32, #tpu.memory_space<vmem>>, vector<8x8x8xf32>
    tpu.vector_store %arg15[%c0_82, %c0_83, %c48_84], %41 {strides = array<i32>} : memref<8x8x72xf32, #tpu.memory_space<vmem>>, vector<8x8x8xf32>,
    %c2_85 = arith.constant 2 : index
    %c1_86 = arith.constant 1 : index
    %c0_87 = arith.constant 0 : index
    %43 = vector.load %arg14[%c2_85, %c1_86, %c0_87] : memref<10x10x8xf32, #tpu.memory_space<vmem>>, vector<8x8x8xf32>
    %c0_88 = arith.constant 0 : index
    %c0_89 = arith.constant 0 : index
    %c56 = arith.constant 56 : index
    %44 = vector.load %arg15[%c0_88, %c0_89, %c56] : memref<8x8x72xf32, #tpu.memory_space<vmem>>, vector<8x8x8xf32>
    tpu.vector_store %arg15[%c0_88, %c0_89, %c56], %43 {strides = array<i32>} : memref<8x8x72xf32, #tpu.memory_space<vmem>>, vector<8x8x8xf32>,
    %c2_90 = arith.constant 2 : index
    %c2_91 = arith.constant 2 : index
    %c0_92 = arith.constant 0 : index
    %45 = vector.load %arg14[%c2_90, %c2_91, %c0_92] : memref<10x10x8xf32, #tpu.memory_space<vmem>>, vector<8x8x8xf32>
    %c0_93 = arith.constant 0 : index
    %c0_94 = arith.constant 0 : index
    %c64 = arith.constant 64 : index
    %46 = vector.load %arg15[%c0_93, %c0_94, %c64] : memref<8x8x72xf32, #tpu.memory_space<vmem>>, vector<8x8x8xf32>
    tpu.vector_store %arg15[%c0_93, %c0_94, %c64], %45 {strides = array<i32>} : memref<8x8x72xf32, #tpu.memory_space<vmem>>, vector<8x8x8xf32>,
    %c0_95 = arith.constant 0 : index
    %c0_96 = arith.constant 0 : index
    %c0_97 = arith.constant 0 : index
    %47 = vector.load %arg15[%c0_95, %c0_96, %c0_97] : memref<8x8x72xf32, #tpu.memory_space<vmem>>, vector<8x8x72xf32>
    %48 = vector.shape_cast %47 : vector<8x8x72xf32> to vector<64x72xf32>
    %c0_98 = arith.constant 0 : index
    %c0_99 = arith.constant 0 : index
    %49 = vector.load %arg5[%c0_98, %c0_99] : memref<72x8xf32, #tpu.memory_space<vmem>>, vector<72x8xf32>
    %cst_100 = arith.constant dense<0.000000e+00> : vector<64x8xf32>
    %50 = tpu.matmul %48, %49, %cst_100 {dimension_numbers = #tpu.dot_dimension_numbers<[1], [0], [0], [1], [0, 0, 1, 1], [], []>} : vector<64x72xf32>, vector<72x8xf32>, vector<64x8xf32> -> vector<64x8xf32>
    %c0_101 = arith.constant 0 : index
    %c0_102 = arith.constant 0 : index
    %51 = vector.load %arg6[%c0_101, %c0_102] : memref<1x8xf32, #tpu.memory_space<vmem>>, vector<1x8xf32>
    %52 = vector.broadcast %51 : vector<1x8xf32> to vector<64x8xf32>
    %53 = arith.mulf %50, %52 : vector<64x8xf32>
    %c0_103 = arith.constant 0 : index
    %c0_104 = arith.constant 0 : index
    %54 = vector.load %arg7[%c0_103, %c0_104] : memref<1x8xf32, #tpu.memory_space<vmem>>, vector<1x8xf32>
    %55 = vector.broadcast %54 : vector<1x8xf32> to vector<64x8xf32>
    %56 = arith.addf %53, %55 : vector<64x8xf32>
    %c0_105 = arith.constant 0 : index
    %c0_106 = arith.constant 0 : index
    %c0_107 = arith.constant 0 : index
    %c0_108 = arith.constant 0 : index
    %57 = vector.load %arg1[%c0_105, %c0_106, %c0_107, %c0_108] : memref<1x8x8x16xf32, #tpu.memory_space<vmem>>, vector<1x8x8x16xf32>
    %58 = vector.shape_cast %57 : vector<1x8x8x16xf32> to vector<8x8x16xf32>
    %59 = vector.extract_strided_slice %58 {offsets = [0, 0, 0], sizes = [8, 8, 4], strides = [1, 1, 1]} : vector<8x8x16xf32> to vector<8x8x4xf32>
    %60 = vector.shape_cast %59 : vector<8x8x4xf32> to vector<64x4xf32>
    %c0_109 = arith.constant 0 : index
    %c0_110 = arith.constant 0 : index
    %61 = vector.load %arg8[%c0_109, %c0_110] : memref<4x8xf32, #tpu.memory_space<vmem>>, vector<4x8xf32>
    %cst_111 = arith.constant dense<0.000000e+00> : vector<64x8xf32>
    %62 = tpu.matmul %60, %61, %cst_111 {dimension_numbers = #tpu.dot_dimension_numbers<[1], [0], [0], [1], [0, 0, 1, 1], [], []>} : vector<64x4xf32>, vector<4x8xf32>, vector<64x8xf32> -> vector<64x8xf32>
    %c0_112 = arith.constant 0 : index
    %c0_113 = arith.constant 0 : index
    %63 = vector.load %arg9[%c0_112, %c0_113] : memref<1x8xf32, #tpu.memory_space<vmem>>, vector<1x8xf32>
    %64 = vector.broadcast %63 : vector<1x8xf32> to vector<64x8xf32>
    %65 = arith.mulf %62, %64 : vector<64x8xf32>
    %c0_114 = arith.constant 0 : index
    %c0_115 = arith.constant 0 : index
    %66 = vector.load %arg10[%c0_114, %c0_115] : memref<1x8xf32, #tpu.memory_space<vmem>>, vector<1x8xf32>
    %67 = vector.broadcast %66 : vector<1x8xf32> to vector<64x8xf32>
    %68 = arith.addf %65, %67 : vector<64x8xf32>
    %69 = arith.addf %56, %68 : vector<64x8xf32>
    %cst_116 = arith.constant 0.000000e+00 : f32
    %70 = vector.broadcast %cst_116 : f32 to vector<64x8xf32>
    %71 = arith.maximumf %69, %70 : vector<64x8xf32>
    %72 = vector.shape_cast %71 : vector<64x8xf32> to vector<8x8x8xf32>
    %c0_117 = arith.constant 0 : index
    %c0_118 = arith.constant 0 : index
    %c0_119 = arith.constant 0 : index
    %c0_120 = arith.constant 0 : index
    %73 = vector.load %arg11[%c0_117, %c0_118, %c0_119, %c0_120] : memref<1x8x8x8xf32, #tpu.memory_space<vmem>>, vector<1x8x8x8xf32>
    %74 = vector.shape_cast %73 : vector<1x8x8x8xf32> to vector<8x8x8xf32>
    %75 = vector.shape_cast %72 : vector<8x8x8xf32> to vector<1x8x8x8xf32>
    tpu.vector_store %arg11[%c0_117, %c0_118, %c0_119, %c0_120], %75 {strides = array<i32>} : memref<1x8x8x8xf32, #tpu.memory_space<vmem>>, vector<1x8x8x8xf32>,
    return
  }
  func.func @transform_0(%arg0: i32) -> (i32, i32, i32, i32) {
    %c0_i32 = arith.constant 0 : i32
    %c0_i32_0 = arith.constant 0 : i32
    %c0_i32_1 = arith.constant 0 : i32
    %c0_i32_2 = arith.constant 0 : i32
    return %arg0, %c0_i32, %c0_i32_0, %c0_i32_1 : i32, i32, i32, i32
  }
  func.func @transform_1(%arg0: i32) -> (i32, i32) {
    %c0_i32 = arith.constant 0 : i32
    %c0_i32_0 = arith.constant 0 : i32
    %c0_i32_1 = arith.constant 0 : i32
    return %c0_i32, %c0_i32_0 : i32, i32
  }
  func.func @transform_2(%arg0: i32) -> (i32, i32) {
    %c0_i32 = arith.constant 0 : i32
    %c0_i32_0 = arith.constant 0 : i32
    %c0_i32_1 = arith.constant 0 : i32
    return %c0_i32, %c0_i32_0 : i32, i32
  }
  func.func @transform_3(%arg0: i32) -> (i32, i32) {
    %c0_i32 = arith.constant 0 : i32
    %c0_i32_0 = arith.constant 0 : i32
    %c0_i32_1 = arith.constant 0 : i32
    return %c0_i32, %c0_i32_0 : i32, i32
  }
  func.func @transform_4(%arg0: i32) -> (i32, i32) {
    %c0_i32 = arith.constant 0 : i32
    %c0_i32_0 = arith.constant 0 : i32
    %c0_i32_1 = arith.constant 0 : i32
    return %c0_i32, %c0_i32_0 : i32, i32
  }
  func.func @transform_5(%arg0: i32) -> (i32, i32) {
    %c0_i32 = arith.constant 0 : i32
    %c0_i32_0 = arith.constant 0 : i32
    %c0_i32_1 = arith.constant 0 : i32
    return %c0_i32, %c0_i32_0 : i32, i32
  }
  func.func @transform_6(%arg0: i32) -> (i32, i32) {
    %c0_i32 = arith.constant 0 : i32
    %c0_i32_0 = arith.constant 0 : i32
    %c0_i32_1 = arith.constant 0 : i32
    return %c0_i32, %c0_i32_0 : i32, i32
  }
  func.func @transform_7(%arg0: i32) -> (i32, i32) {
    %c0_i32 = arith.constant 0 : i32
    %c0_i32_0 = arith.constant 0 : i32
    %c0_i32_1 = arith.constant 0 : i32
    return %c0_i32, %c0_i32_0 : i32, i32
  }
  func.func @transform_8(%arg0: i32) -> (i32, i32) {
    %c0_i32 = arith.constant 0 : i32
    %c0_i32_0 = arith.constant 0 : i32
    %c0_i32_1 = arith.constant 0 : i32
    return %c0_i32, %c0_i32_0 : i32, i32
  }
  func.func @transform_9(%arg0: i32) -> (i32, i32) {
    %c0_i32 = arith.constant 0 : i32
    %c0_i32_0 = arith.constant 0 : i32
    %c0_i32_1 = arith.constant 0 : i32
    return %c0_i32, %c0_i32_0 : i32, i32
  }
  func.func @transform_10(%arg0: i32) -> (i32, i32, i32, i32) {
    %c0_i32 = arith.constant 0 : i32
    %c0_i32_0 = arith.constant 0 : i32
    %c0_i32_1 = arith.constant 0 : i32
    %c0_i32_2 = arith.constant 0 : i32
    return %arg0, %c0_i32, %c0_i32_0, %c0_i32_1 : i32, i32, i32, i32
  }
}

</mosaic_0001>

<llo_original>
// kernel: tpu_custom_call.1
$region0: #{tpu_custom_call.1}
  #allocation0 [shape = 'u32[]', space=smem, size = 0x4, offset = 0x4, fixed_abs, tag = 'smem constant byte address 0x4 - core index']
  #allocation1 [shape = 'u32[72,128]{1,0:T(1,128)}', space=vmem, size = 0x9000, scoped, tag = 'internal scratch']
  #allocation2 [shape = 'f32[9,9,16]{2,1,0:T(8,128)}', space=vmem, size = 0x12000, scoped, tag = 'scratch operand']
  #allocation3 [shape = 'f32[8,8,64]{2,1,0:T(8,128)}', space=vmem, size = 0x8000, scoped, tag = 'scratch operand']
  #allocation4 [shape = 'f32[10,10,8]{2,1,0:T(8,128)}', space=vmem, size = 0x14000, scoped, tag = 'scratch operand']
  #allocation5 [shape = 'f32[8,8,72]{2,1,0:T(8,128)}', space=vmem, size = 0x8000, scoped, tag = 'scratch operand']
  %s0 = inlined_call_operand.vmem [shape: f32[2,8,8,16], index: 0, kind: input, shape index: {}]
  %s1 = inlined_call_operand.vmem [shape: f32[64,8], index: 1, kind: input, shape index: {}]
  %s2 = inlined_call_operand.vmem [shape: f32[1,8], index: 2, kind: input, shape index: {}]
  %s3 = inlined_call_operand.vmem [shape: f32[1,8], index: 3, kind: input, shape index: {}]
  %s4 = inlined_call_operand.vmem [shape: f32[72,8], index: 4, kind: input, shape index: {}]
  %s5 = inlined_call_operand.vmem [shape: f32[1,8], index: 5, kind: input, shape index: {}]
  %s6 = inlined_call_operand.vmem [shape: f32[1,8], index: 6, kind: input, shape index: {}]
  %s7 = inlined_call_operand.vmem [shape: f32[4,8], index: 7, kind: input, shape index: {}]
  %s8 = inlined_call_operand.vmem [shape: f32[1,8], index: 8, kind: input, shape index: {}]
  %s9 = inlined_call_operand.vmem [shape: f32[1,8], index: 9, kind: input, shape index: {}]
  %s10 = inlined_call_operand.hbm [shape: f32[2,8,8,8], index: 10, kind: output, shape index: {}]
  %s11 = sld [smem:[#allocation0]]
  $region73: #{tpu_custom_call.1} parent=0
    _
  %s13 = ssub.s32 1, %s11
  %s14 = scalar_select 0, %s13, %s11
  $region1: #{tpu_custom_call.1} parent=0
    #allocation6 [shape = 'u8[65536]{0}', space=vmem, size = 0x10000, scoped, tag = 'output window, operand 0']
    #allocation7 [shape = 's32[2]{0}', space=sflag, size = 0x8, scoped, tag = 'scoped memory for tpu_custom_call.1']
    %15 = vsyncpa [#allocation7], 0
    %s16 = scalar_lea.sflag [#allocation7], 1
    %17 = vsyncpa %s16, 0
    loop: start=0, step=1, limit=4
    $region2: #{tpu_custom_call.1} parent=1 // loop_pre_header
      _
    $region3: #{tpu_custom_call.1} parent=1 // loop_header
      %s19 = sphi 0, %s23
      %p20 = scmp.ge.s32.totalorder %s19, 4
      %s29 = sphi 0, %s31
      %s32 = sphi 0, %s29
      %s33 = sphi 0, %s32
      %s49 = sphi 0, %s33
      %s53 = sphi 0, %s53
      %s55 = sphi 0, %s53
      %s56 = sphi 0, %s55
      %s70 = sphi 0, %s56
      %s74 = sphi 0, %s74
      %s76 = sphi 0, %s74
      %s77 = sphi 0, %s76
      %s91 = sphi 0, %s77
      %s95 = sphi 0, %s95
      %s97 = sphi 0, %s95
      %s98 = sphi 0, %s97
      %s112 = sphi 0, %s98
      %s116 = sphi 0, %s116
      %s118 = sphi 0, %s116
      %s119 = sphi 0, %s118
      %s133 = sphi 0, %s119
      %s137 = sphi 0, %s137
      %s139 = sphi 0, %s137
      %s140 = sphi 0, %s139
      %s154 = sphi 0, %s140
      %s158 = sphi 0, %s158
      %s160 = sphi 0, %s158
      %s161 = sphi 0, %s160
      %s175 = sphi 0, %s161
      %s179 = sphi 0, %s179
      %s181 = sphi 0, %s179
      %s182 = sphi 0, %s181
      %s196 = sphi 0, %s182
      %s200 = sphi 0, %s200
      %s202 = sphi 0, %s200
      %s203 = sphi 0, %s202
      %s217 = sphi 0, %s203
      %s221 = sphi 0, %s221
      %s223 = sphi 0, %s221
      %s224 = sphi 0, %s223
      %s238 = sphi 0, %s224
      %s244 = sphi 0, %s246
      %s247 = sphi 0, %s244
      %s248 = sphi 0, %s247
      %s264 = sphi 0, %s248
    $region4: #{tpu_custom_call.1} parent=1 // loop_header_branch
      %22 = sbr.rel (%p20) target = $region8
    $region5: #{tpu_custom_call.1} parent=1 // loop_body
      %s24 = ssub.s32 %s19, 1
      %s25 = ssub.s32 %s19, 2
      %s26 = sadd.s32 %s19, 1
      %s27 = ssub.s32 %s19, %s26
      %p28 = scmp.eq.s32.totalorder %s27, 0
      %s30 = sadd.s32 %s29, 1
      %s31 = scalar_select %p28, %s29, %s30
      %p34 = pneg %p28
      %p35 = scmp.eq.s32.totalorder %s19, 1
      %p36 = por %p34, %p35
      %p37 = scmp.ne.s32.totalorder %s29, %s32
      %p38 = scmp.eq.s32.totalorder %s19, 0
      %p39 = por %p37, %p38
      %p40 = scmp.ne.s32.totalorder %s29, %s32
      %p41 = scmp.eq.s32.totalorder %s24, 1
      %p42 = por %p40, %p41
      %p43 = scmp.ne.s32.totalorder %s32, %s33
      %p44 = scmp.eq.s32.totalorder %s24, 0
      %p45 = por %p43, %p44
      %p46 = scmp.ne.s32.totalorder %s32, %s33
      %p47 = scmp.eq.s32.totalorder %s25, 1
      %p48 = por %p46, %p47
      %p50 = scmp.ne.s32.totalorder %s33, %s49
      %p51 = scmp.eq.s32.totalorder %s25, 0
      %p52 = por %p50, %p51
      %s54 = sadd.s32 %s53, 1
      %p57 = scmp.eq.s32.totalorder %s19, 1
      %p58 = scmp.ne.s32.totalorder %s53, %s55
      %p59 = scmp.eq.s32.totalorder %s19, 0
      %p60 = por %p58, %p59
      %p61 = scmp.ne.s32.totalorder %s53, %s55
      %p62 = scmp.eq.s32.totalorder %s24, 1
      %p63 = por %p61, %p62
      %p64 = scmp.ne.s32.totalorder %s55, %s56
      %p65 = scmp.eq.s32.totalorder %s24, 0
      %p66 = por %p64, %p65
      %p67 = scmp.ne.s32.totalorder %s55, %s56
      %p68 = scmp.eq.s32.totalorder %s25, 1
      %p69 = por %p67, %p68
      %p71 = scmp.ne.s32.totalorder %s56, %s70
      %p72 = scmp.eq.s32.totalorder %s25, 0
      %p73 = por %p71, %p72
      %s75 = sadd.s32 %s74, 1
      %p78 = scmp.eq.s32.totalorder %s19, 1
      %p79 = scmp.ne.s32.totalorder %s74, %s76
      %p80 = scmp.eq.s32.totalorder %s19, 0
      %p81 = por %p79, %p80
      %p82 = scmp.ne.s32.totalorder %s74, %s76
      %p83 = scmp.eq.s32.totalorder %s24, 1
      %p84 = por %p82, %p83
      %p85 = scmp.ne.s32.totalorder %s76, %s77
      %p86 = scmp.eq.s32.totalorder %s24, 0
      %p87 = por %p85, %p86
      %p88 = scmp.ne.s32.totalorder %s76, %s77
      %p89 = scmp.eq.s32.totalorder %s25, 1
      %p90 = por %p88, %p89
      %p92 = scmp.ne.s32.totalorder %s77, %s91
      %p93 = scmp.eq.s32.totalorder %s25, 0
      %p94 = por %p92, %p93
      %s96 = sadd.s32 %s95, 1
      %p99 = scmp.eq.s32.totalorder %s19, 1
      %p100 = scmp.ne.s32.totalorder %s95, %s97
      %p101 = scmp.eq.s32.totalorder %s19, 0
      %p102 = por %p100, %p101
      %p103 = scmp.ne.s32.totalorder %s95, %s97
      %p104 = scmp.eq.s32.totalorder %s24, 1
      %p105 = por %p103, %p104
      %p106 = scmp.ne.s32.totalorder %s97, %s98
      %p107 = scmp.eq.s32.totalorder %s24, 0
      %p108 = por %p106, %p107
      %p109 = scmp.ne.s32.totalorder %s97, %s98
      %p110 = scmp.eq.s32.totalorder %s25, 1
      %p111 = por %p109, %p110
      %p113 = scmp.ne.s32.totalorder %s98, %s112
      %p114 = scmp.eq.s32.totalorder %s25, 0
      %p115 = por %p113, %p114
      %s117 = sadd.s32 %s116, 1
      %p120 = scmp.eq.s32.totalorder %s19, 1
      %p121 = scmp.ne.s32.totalorder %s116, %s118
      %p122 = scmp.eq.s32.totalorder %s19, 0
      %p123 = por %p121, %p122
      %p124 = scmp.ne.s32.totalorder %s116, %s118
      %p125 = scmp.eq.s32.totalorder %s24, 1
      %p126 = por %p124, %p125
      %p127 = scmp.ne.s32.totalorder %s118, %s119
      %p128 = scmp.eq.s32.totalorder %s24, 0
      %p129 = por %p127, %p128
      %p130 = scmp.ne.s32.totalorder %s118, %s119
      %p131 = scmp.eq.s32.totalorder %s25, 1
      %p132 = por %p130, %p131
      %p134 = scmp.ne.s32.totalorder %s119, %s133
      %p135 = scmp.eq.s32.totalorder %s25, 0
      %p136 = por %p134, %p135
      %s138 = sadd.s32 %s137, 1
      %p141 = scmp.eq.s32.totalorder %s19, 1
      %p142 = scmp.ne.s32.totalorder %s137, %s139
      %p143 = scmp.eq.s32.totalorder %s19, 0
      %p144 = por %p142, %p143
      %p145 = scmp.ne.s32.totalorder %s137, %s139
      %p146 = scmp.eq.s32.totalorder %s24, 1
      %p147 = por %p145, %p146
      %p148 = scmp.ne.s32.totalorder %s139, %s140
      %p149 = scmp.eq.s32.totalorder %s24, 0
      %p150 = por %p148, %p149
      %p151 = scmp.ne.s32.totalorder %s139, %s140
      %p152 = scmp.eq.s32.totalorder %s25, 1
      %p153 = por %p151, %p152
      %p155 = scmp.ne.s32.totalorder %s140, %s154
      %p156 = scmp.eq.s32.totalorder %s25, 0
      %p157 = por %p155, %p156
      %s159 = sadd.s32 %s158, 1
      %p162 = scmp.eq.s32.totalorder %s19, 1
      %p163 = scmp.ne.s32.totalorder %s158, %s160
      %p164 = scmp.eq.s32.totalorder %s19, 0
      %p165 = por %p163, %p164
      %p166 = scmp.ne.s32.totalorder %s158, %s160
      %p167 = scmp.eq.s32.totalorder %s24, 1
      %p168 = por %p166, %p167
      %p169 = scmp.ne.s32.totalorder %s160, %s161
      %p170 = scmp.eq.s32.totalorder %s24, 0
      %p171 = por %p169, %p170
      %p172 = scmp.ne.s32.totalorder %s160, %s161
      %p173 = scmp.eq.s32.totalorder %s25, 1
      %p174 = por %p172, %p173
      %p176 = scmp.ne.s32.totalorder %s161, %s175
      %p177 = scmp.eq.s32.totalorder %s25, 0
      %p178 = por %p176, %p177
      %s180 = sadd.s32 %s179, 1
      %p183 = scmp.eq.s32.totalorder %s19, 1
      %p184 = scmp.ne.s32.totalorder %s179, %s181
      %p185 = scmp.eq.s32.totalorder %s19, 0
      %p186 = por %p184, %p185
      %p187 = scmp.ne.s32.totalorder %s179, %s181
      %p188 = scmp.eq.s32.totalorder %s24, 1
      %p189 = por %p187, %p188
      %p190 = scmp.ne.s32.totalorder %s181, %s182
      %p191 = scmp.eq.s32.totalorder %s24, 0
      %p192 = por %p190, %p191
      %p193 = scmp.ne.s32.totalorder %s181, %s182
      %p194 = scmp.eq.s32.totalorder %s25, 1
      %p195 = por %p193, %p194
      %p197 = scmp.ne.s32.totalorder %s182, %s196
      %p198 = scmp.eq.s32.totalorder %s25, 0
      %p199 = por %p197, %p198
      %s201 = sadd.s32 %s200, 1
      %p204 = scmp.eq.s32.totalorder %s19, 1
      %p205 = scmp.ne.s32.totalorder %s200, %s202
      %p206 = scmp.eq.s32.totalorder %s19, 0
      %p207 = por %p205, %p206
      %p208 = scmp.ne.s32.totalorder %s200, %s202
      %p209 = scmp.eq.s32.totalorder %s24, 1
      %p210 = por %p208, %p209
      %p211 = scmp.ne.s32.totalorder %s202, %s203
      %p212 = scmp.eq.s32.totalorder %s24, 0
      %p213 = por %p211, %p212
      %p214 = scmp.ne.s32.totalorder %s202, %s203
      %p215 = scmp.eq.s32.totalorder %s25, 1
      %p216 = por %p214, %p215
      %p218 = scmp.ne.s32.totalorder %s203, %s217
      %p219 = scmp.eq.s32.totalorder %s25, 0
      %p220 = por %p218, %p219
      %s222 = sadd.s32 %s221, 1
      %p225 = scmp.eq.s32.totalorder %s19, 1
      %p226 = scmp.ne.s32.totalorder %s221, %s223
      %p227 = scmp.eq.s32.totalorder %s19, 0
      %p228 = por %p226, %p227
      %p229 = scmp.ne.s32.totalorder %s221, %s223
      %p230 = scmp.eq.s32.totalorder %s24, 1
      %p231 = por %p229, %p230
      %p232 = scmp.ne.s32.totalorder %s223, %s224
      %p233 = scmp.eq.s32.totalorder %s24, 0
      %p234 = por %p232, %p233
      %p235 = scmp.ne.s32.totalorder %s223, %s224
      %p236 = scmp.eq.s32.totalorder %s25, 1
      %p237 = por %p235, %p236
      %p239 = scmp.ne.s32.totalorder %s224, %s238
      %p240 = scmp.eq.s32.totalorder %s25, 0
      %p241 = por %p239, %p240
      %s242 = ssub.s32 %s19, %s26
      %p243 = scmp.eq.s32.totalorder %s242, 0
      %s245 = sadd.s32 %s244, 1
      %s246 = scalar_select %p243, %s244, %s245
      %p249 = pneg %p243
      %p250 = scmp.eq.s32.totalorder %s19, 1
      %p251 = por %p249, %p250
      %p252 = scmp.ne.s32.totalorder %s244, %s247
      %p253 = scmp.eq.s32.totalorder %s19, 0
      %p254 = por %p252, %p253
      %p255 = scmp.ne.s32.totalorder %s244, %s247
      %p256 = scmp.eq.s32.totalorder %s24, 1
      %p257 = por %p255, %p256
      %p258 = scmp.ne.s32.totalorder %s247, %s248
      %p259 = scmp.eq.s32.totalorder %s24, 0
      %p260 = por %p258, %p259
      %p261 = scmp.ne.s32.totalorder %s247, %s248
      %p262 = scmp.eq.s32.totalorder %s25, 1
      %p263 = por %p261, %p262
      %p265 = scmp.ne.s32.totalorder %s248, %s264
      %p266 = scmp.eq.s32.totalorder %s25, 0
      %p267 = por %p265, %p266
      %p268 = scmp.le.s32.totalorder 1, %s19
      %p269 = scmp.lt.s32.totalorder %s19, 3
      %p270 = pnand %p268, %p269
      %p271 = pneg %p270
      // Predicated region
      $region9: #{tpu_custom_call.1} parent=5 // pred_check
        _
      $region10: #{tpu_custom_call.1} parent=5 // pred_check_branch
        %273 = sbr.rel (%p270) target = $region12
      $region11: #{tpu_custom_call.1} parent=5 // pred_region
        %s274 = ssub.s32 %s19, 1
        // Predicated region
        $region13: #{tpu_custom_call.1} parent=11 // pred_check
          %p275 = pneg %p66
        $region14: #{tpu_custom_call.1} parent=11 // pred_check_branch
          %277 = sbr.rel (%p275) target = $region16
        $region15: #{tpu_custom_call.1} parent=11 // pred_region
          _
        $region16: #{tpu_custom_call.1} parent=11 // pred_fallthru
          _
        // Predicated region
        $region17: #{tpu_custom_call.1} parent=11 // pred_check
          %p278 = pneg %p87
        $region18: #{tpu_custom_call.1} parent=11 // pred_check_branch
          %280 = sbr.rel (%p278) target = $region20
        $region19: #{tpu_custom_call.1} parent=11 // pred_region
          _
        $region20: #{tpu_custom_call.1} parent=11 // pred_fallthru
          _
        // Predicated region
        $region21: #{tpu_custom_call.1} parent=11 // pred_check
          %p281 = pneg %p108
        $region22: #{tpu_custom_call.1} parent=11 // pred_check_branch
          %283 = sbr.rel (%p281) target = $region24
        $region23: #{tpu_custom_call.1} parent=11 // pred_region
          _
        $region24: #{tpu_custom_call.1} parent=11 // pred_fallthru
          _
        // Predicated region
        $region25: #{tpu_custom_call.1} parent=11 // pred_check
          %p284 = pneg %p129
        $region26: #{tpu_custom_call.1} parent=11 // pred_check_branch
          %286 = sbr.rel (%p284) target = $region28
        $region27: #{tpu_custom_call.1} parent=11 // pred_region
          _
        $region28: #{tpu_custom_call.1} parent=11 // pred_fallthru
          _
        // Predicated region
        $region29: #{tpu_custom_call.1} parent=11 // pred_check
          %p287 = pneg %p150
        $region30: #{tpu_custom_call.1} parent=11 // pred_check_branch
          %289 = sbr.rel (%p287) target = $region32
        $region31: #{tpu_custom_call.1} parent=11 // pred_region
          _
        $region32: #{tpu_custom_call.1} parent=11 // pred_fallthru
          _
        // Predicated region
        $region33: #{tpu_custom_call.1} parent=11 // pred_check
          %p290 = pneg %p171
        $region34: #{tpu_custom_call.1} parent=11 // pred_check_branch
          %292 = sbr.rel (%p290) target = $region36
        $region35: #{tpu_custom_call.1} parent=11 // pred_region
          _
        $region36: #{tpu_custom_call.1} parent=11 // pred_fallthru
          _
        // Predicated region
        $region37: #{tpu_custom_call.1} parent=11 // pred_check
          %p293 = pneg %p192
        $region38: #{tpu_custom_call.1} parent=11 // pred_check_branch
          %295 = sbr.rel (%p293) target = $region40
        $region39: #{tpu_custom_call.1} parent=11 // pred_region
          _
        $region40: #{tpu_custom_call.1} parent=11 // pred_fallthru
          _
        // Predicated region
        $region41: #{tpu_custom_call.1} parent=11 // pred_check
          %p296 = pneg %p213
        $region42: #{tpu_custom_call.1} parent=11 // pred_check_branch
          %298 = sbr.rel (%p296) target = $region44
        $region43: #{tpu_custom_call.1} parent=11 // pred_region
          _
        $region44: #{tpu_custom_call.1} parent=11 // pred_fallthru
          _
        // Predicated region
        $region45: #{tpu_custom_call.1} parent=11 // pred_check
          %p299 = pneg %p234
        $region46: #{tpu_custom_call.1} parent=11 // pred_check_branch
          %301 = sbr.rel (%p299) target = $region48
        $region47: #{tpu_custom_call.1} parent=11 // pred_region
          _
        $region48: #{tpu_custom_call.1} parent=11 // pred_fallthru
          _
      $region12: #{tpu_custom_call.1} parent=5 // pred_fallthru
        _
      %p302 = scmp.lt.s32.totalorder %s19, 2
      // Predicated region
      $region49: #{tpu_custom_call.1} parent=5 // pred_check
        %p303 = pneg %p302
      $region50: #{tpu_custom_call.1} parent=5 // pred_check_branch
        %305 = sbr.rel (%p303) target = $region52
      $region51: #{tpu_custom_call.1} parent=5 // pred_region
        // Predicated region
        $region53: #{tpu_custom_call.1} parent=51 // pred_check
          %p306 = pneg %p39
        $region54: #{tpu_custom_call.1} parent=51 // pred_check_branch
          %308 = sbr.rel (%p306) target = $region56
        $region55: #{tpu_custom_call.1} parent=51 // pred_region
          %p309 = scmp.lt.s32.totalorder %s19, 1
          %s310 = scalar_select %p309, %s19, 1
          %s311 = smul.addr %s310, 8
          %s312 = smul.addr %s311, 8
          %s313 = scalar_lea.vmem %s0, %s312
        $region56: #{tpu_custom_call.1} parent=51 // pred_fallthru
          _
      $region52: #{tpu_custom_call.1} parent=5 // pred_fallthru
        _
      %p314 = scmp.le.s32.totalorder 1, %s19
      %p315 = scmp.lt.s32.totalorder %s19, 3
      %p316 = pnand %p314, %p315
      %p317 = pneg %p316
      // Predicated region
      $region57: #{tpu_custom_call.1} parent=5 // pred_check
        _
      $region58: #{tpu_custom_call.1} parent=5 // pred_check_branch
        %319 = sbr.rel (%p316) target = $region60
      $region59: #{tpu_custom_call.1} parent=5 // pred_region
        %s320 = ssub.s32 %s19, 1
        %p321 = scmp.lt.s32.totalorder %s24, 1
        %s322 = scalar_select %p321, %s24, 1
        %s323 = smul.addr %s322, 8
        %s324 = smul.addr %s323, 8
        %s325 = scalar_lea.vmem %s0, %s324
        %p326 = pneg %p45
        %p327 = pneg %p42
        %p328 = pneg %p66
        %p329 = pneg %p63
        %p330 = pneg %p87
        %p331 = pneg %p84
        %p332 = pneg %p108
        %p333 = pneg %p105
        %p334 = pneg %p129
        %p335 = pneg %p126
        %p336 = pneg %p150
        %p337 = pneg %p147
        %p338 = pneg %p171
        %p339 = pneg %p168
        %p340 = pneg %p192
        %p341 = pneg %p189
        %p342 = pneg %p213
        %p343 = pneg %p210
        %p344 = pneg %p234
        %p345 = pneg %p231
        %p346 = pneg %p260
        %p347 = pneg %p257
        %s348 = sand.u32 %s247, 1
        %s349 = scalar_lea.sflag [#allocation7], %s348
        %s350 = sand.u32 %s247, 1
        %s351 = smul.addr %s350, 64
        %s352 = scalar_lea.vmem [#allocation6], %s351
        %p353 = scmp.lt.s32.totalorder %s24, 1
        %s354 = scalar_select %p353, %s24, 1
        %s355 = smul.addr %s354, 8
        %s356 = smul.addr %s355, 8
        %s357 = scalar_lea.vmem %s0, %s356
        %vm358 = vcmask 130048
        %359 = vst.msk [vmem:[#allocation2] sm:$0xff] %vm358, 0.0
        %vm360 = vcmask 122880
        %361 = vst.msk [vmem:[#allocation2 + $0x8] sm:$0x1] %vm360, 0.0
        %362 = vst.msk [vmem:[#allocation2 + $0x10] sm:$0xff] %vm358, 0.0
        %363 = vst.msk [vmem:[#allocation2 + $0x18] sm:$0x1] %vm360, 0.0
        %364 = vst.msk [vmem:[#allocation2 + $0x20] sm:$0xff] %vm358, 0.0
        %365 = vst.msk [vmem:[#allocation2 + $0x28] sm:$0x1] %vm360, 0.0
        %366 = vst.msk [vmem:[#allocation2 + $0x30] sm:$0xff] %vm358, 0.0
        %367 = vst.msk [vmem:[#allocation2 + $0x38] sm:$0x1] %vm360, 0.0
        %368 = vst.msk [vmem:[#allocation2 + $0x40] sm:$0xff] %vm358, 0.0
        %369 = vst.msk [vmem:[#allocation2 + $0x48] sm:$0x1] %vm360, 0.0
        %370 = vst.msk [vmem:[#allocation2 + $0x50] sm:$0xff] %vm358, 0.0
        %371 = vst.msk [vmem:[#allocation2 + $0x58] sm:$0x1] %vm360, 0.0
        %372 = vst.msk [vmem:[#allocation2 + $0x60] sm:$0xff] %vm358, 0.0
        %373 = vst.msk [vmem:[#allocation2 + $0x68] sm:$0x1] %vm360, 0.0
        %374 = vst.msk [vmem:[#allocation2 + $0x70] sm:$0xff] %vm358, 0.0
        %375 = vst.msk [vmem:[#allocation2 + $0x78] sm:$0x1] %vm360, 0.0
        %376 = vst.msk [vmem:[#allocation2 + $0x80] sm:$0xff] %vm358, 0.0
        %377 = vst.msk [vmem:[#allocation2 + $0x88] sm:$0x1] %vm360, 0.0
        %v378 = vld [vmem:[%s357] sm:$0xff]
        %v379 = vld [vmem:[%s357 + $0x8] sm:$0xff]
        %v380 = vld [vmem:[%s357 + $0x10] sm:$0xff]
        %v381 = vld [vmem:[%s357 + $0x18] sm:$0xff]
        %v382 = vld [vmem:[%s357 + $0x20] sm:$0xff]
        %v383 = vld [vmem:[%s357 + $0x28] sm:$0xff]
        %v384 = vld [vmem:[%s357 + $0x30] sm:$0xff]
        %v385 = vld [vmem:[%s357 + $0x38] sm:$0xff]
        %s386 = scalar_lea.vmem [#allocation2], 16
        %387 = vst.msk [vmem:[%s386 + $0x1] sm:$0xff] %vm358, %v378
        %388 = vst.msk [vmem:[%s386 + $0x11] sm:$0xff] %vm358, %v379
        %389 = vst.msk [vmem:[%s386 + $0x21] sm:$0xff] %vm358, %v380
        %390 = vst.msk [vmem:[%s386 + $0x31] sm:$0xff] %vm358, %v381
        %391 = vst.msk [vmem:[%s386 + $0x41] sm:$0xff] %vm358, %v382
        %392 = vst.msk [vmem:[%s386 + $0x51] sm:$0xff] %vm358, %v383
        %393 = vst.msk [vmem:[%s386 + $0x61] sm:$0xff] %vm358, %v384
        %394 = vst.msk [vmem:[%s386 + $0x71] sm:$0xff] %vm358, %v385
        %v395 = vld [vmem:[#allocation2] sm:$0xff]
        %v396 = vld [vmem:[#allocation2 + $0x10] sm:$0xff]
        %v397 = vld [vmem:[#allocation2 + $0x20] sm:$0xff]
        %v398 = vld [vmem:[#allocation2 + $0x30] sm:$0xff]
        %v399 = vld [vmem:[#allocation2 + $0x40] sm:$0xff]
        %v400 = vld [vmem:[#allocation2 + $0x50] sm:$0xff]
        %v401 = vld [vmem:[#allocation2 + $0x60] sm:$0xff]
        %v402 = vld [vmem:[#allocation2 + $0x70] sm:$0xff]
        %403 = vst.msk [vmem:[#allocation3] sm:$0xff] %vm358, %v395
        %404 = vst.msk [vmem:[#allocation3 + $0x8] sm:$0xff] %vm358, %v396
        %405 = vst.msk [vmem:[#allocation3 + $0x10] sm:$0xff] %vm358, %v397
        %406 = vst.msk [vmem:[#allocation3 + $0x18] sm:$0xff] %vm358, %v398
        %407 = vst.msk [vmem:[#allocation3 + $0x20] sm:$0xff] %vm358, %v399
        %408 = vst.msk [vmem:[#allocation3 + $0x28] sm:$0xff] %vm358, %v400
        %409 = vst.msk [vmem:[#allocation3 + $0x30] sm:$0xff] %vm358, %v401
        %410 = vst.msk [vmem:[#allocation3 + $0x38] sm:$0xff] %vm358, %v402
        %v411 = vld [vmem:[#allocation2 + $0x1] sm:$0xff]
        %v412 = vld [vmem:[#allocation2 + $0x11] sm:$0xff]
        %v413 = vld [vmem:[#allocation2 + $0x21] sm:$0xff]
        %v414 = vld [vmem:[#allocation2 + $0x31] sm:$0xff]
        %v415 = vld [vmem:[#allocation2 + $0x41] sm:$0xff]
        %v416 = vld [vmem:[#allocation2 + $0x51] sm:$0xff]
        %v417 = vld [vmem:[#allocation2 + $0x61] sm:$0xff]
        %v418 = vld [vmem:[#allocation2 + $0x71] sm:$0xff]
        %427 = vrot.lane.b32.xlu0 %v411, 16
        %v428 = vpop.permute.xlu0 %427
        %429 = vrot.lane.b32.xlu0 %v412, 16
        %v430 = vpop.permute.xlu0 %429
        %431 = vrot.lane.b32.xlu0 %v413, 16
        %v432 = vpop.permute.xlu0 %431
        %433 = vrot.lane.b32.xlu0 %v414, 16
        %v434 = vpop.permute.xlu0 %433
        %435 = vrot.lane.b32.xlu0 %v415, 16
        %v436 = vpop.permute.xlu0 %435
        %437 = vrot.lane.b32.xlu0 %v416, 16
        %v438 = vpop.permute.xlu0 %437
        %439 = vrot.lane.b32.xlu0 %v417, 16
        %v440 = vpop.permute.xlu0 %439
        %441 = vrot.lane.b32.xlu0 %v418, 16
        %v442 = vpop.permute.xlu0 %441
        %vm451 = vcmask 261248
        %452 = vst.msk [vmem:[#allocation3] sm:$0xff] %vm451, %v428
        %453 = vst.msk [vmem:[#allocation3 + $0x8] sm:$0xff] %vm451, %v430
        %454 = vst.msk [vmem:[#allocation3 + $0x10] sm:$0xff] %vm451, %v432
        %455 = vst.msk [vmem:[#allocation3 + $0x18] sm:$0xff] %vm451, %v434
        %456 = vst.msk [vmem:[#allocation3 + $0x20] sm:$0xff] %vm451, %v436
        %457 = vst.msk [vmem:[#allocation3 + $0x28] sm:$0xff] %vm451, %v438
        %458 = vst.msk [vmem:[#allocation3 + $0x30] sm:$0xff] %vm451, %v440
        %459 = vst.msk [vmem:[#allocation3 + $0x38] sm:$0xff] %vm451, %v442
        %v460 = vld [vmem:[%s386] sm:$0xff]
        %v461 = vld [vmem:[%s386 + $0x10] sm:$0xff]
        %v462 = vld [vmem:[%s386 + $0x20] sm:$0xff]
        %v463 = vld [vmem:[%s386 + $0x30] sm:$0xff]
        %v464 = vld [vmem:[%s386 + $0x40] sm:$0xff]
        %v465 = vld [vmem:[%s386 + $0x50] sm:$0xff]
        %v466 = vld [vmem:[%s386 + $0x60] sm:$0xff]
        %v467 = vld [vmem:[%s386 + $0x70] sm:$0xff]
        %476 = vrot.lane.b32.xlu0 %v460, 32
        %v477 = vpop.permute.xlu0 %476
        %478 = vrot.lane.b32.xlu0 %v461, 32
        %v479 = vpop.permute.xlu0 %478
        %480 = vrot.lane.b32.xlu0 %v462, 32
        %v481 = vpop.permute.xlu0 %480
        %482 = vrot.lane.b32.xlu0 %v463, 32
        %v483 = vpop.permute.xlu0 %482
        %484 = vrot.lane.b32.xlu0 %v464, 32
        %v485 = vpop.permute.xlu0 %484
        %486 = vrot.lane.b32.xlu0 %v465, 32
        %v487 = vpop.permute.xlu0 %486
        %488 = vrot.lane.b32.xlu0 %v466, 32
        %v489 = vpop.permute.xlu0 %488
        %490 = vrot.lane.b32.xlu0 %v467, 32
        %v491 = vpop.permute.xlu0 %490
        %vm500 = vcmask 392448
        %501 = vst.msk [vmem:[#allocation3] sm:$0xff] %vm500, %v477
        %502 = vst.msk [vmem:[#allocation3 + $0x8] sm:$0xff] %vm500, %v479
        %503 = vst.msk [vmem:[#allocation3 + $0x10] sm:$0xff] %vm500, %v481
        %504 = vst.msk [vmem:[#allocation3 + $0x18] sm:$0xff] %vm500, %v483
        %505 = vst.msk [vmem:[#allocation3 + $0x20] sm:$0xff] %vm500, %v485
        %506 = vst.msk [vmem:[#allocation3 + $0x28] sm:$0xff] %vm500, %v487
        %507 = vst.msk [vmem:[#allocation3 + $0x30] sm:$0xff] %vm500, %v489
        %508 = vst.msk [vmem:[#allocation3 + $0x38] sm:$0xff] %vm500, %v491
        %v509 = vld [vmem:[%s386 + $0x1] sm:$0xff]
        %v510 = vld [vmem:[%s386 + $0x11] sm:$0xff]
        %v511 = vld [vmem:[%s386 + $0x21] sm:$0xff]
        %v512 = vld [vmem:[%s386 + $0x31] sm:$0xff]
        %v513 = vld [vmem:[%s386 + $0x41] sm:$0xff]
        %v514 = vld [vmem:[%s386 + $0x51] sm:$0xff]
        %v515 = vld [vmem:[%s386 + $0x61] sm:$0xff]
        %v516 = vld [vmem:[%s386 + $0x71] sm:$0xff]
        %525 = vrot.lane.b32.xlu0 %v509, 48
        %v526 = vpop.permute.xlu0 %525
        %527 = vrot.lane.b32.xlu0 %v510, 48
        %v528 = vpop.permute.xlu0 %527
        %529 = vrot.lane.b32.xlu0 %v511, 48
        %v530 = vpop.permute.xlu0 %529
        %531 = vrot.lane.b32.xlu0 %v512, 48
        %v532 = vpop.permute.xlu0 %531
        %533 = vrot.lane.b32.xlu0 %v513, 48
        %v534 = vpop.permute.xlu0 %533
        %535 = vrot.lane.b32.xlu0 %v514, 48
        %v536 = vpop.permute.xlu0 %535
        %537 = vrot.lane.b32.xlu0 %v515, 48
        %v538 = vpop.permute.xlu0 %537
        %539 = vrot.lane.b32.xlu0 %v516, 48
        %v540 = vpop.permute.xlu0 %539
        %vm549 = vcmask 523648
        %550 = vst.msk [vmem:[#allocation3] sm:$0xff] %vm549, %v526
        %551 = vst.msk [vmem:[#allocation3 + $0x8] sm:$0xff] %vm549, %v528
        %552 = vst.msk [vmem:[#allocation3 + $0x10] sm:$0xff] %vm549, %v530
        %553 = vst.msk [vmem:[#allocation3 + $0x18] sm:$0xff] %vm549, %v532
        %554 = vst.msk [vmem:[#allocation3 + $0x20] sm:$0xff] %vm549, %v534
        %555 = vst.msk [vmem:[#allocation3 + $0x28] sm:$0xff] %vm549, %v536
        %556 = vst.msk [vmem:[#allocation3 + $0x30] sm:$0xff] %vm549, %v538
        %557 = vst.msk [vmem:[#allocation3 + $0x38] sm:$0xff] %vm549, %v540
        %v558 = vld [vmem:[#allocation3] sm:$0xff]
        %v559 = vld [vmem:[#allocation3 + $0x8] sm:$0xff]
        %v560 = vld [vmem:[#allocation3 + $0x10] sm:$0xff]
        %v561 = vld [vmem:[#allocation3 + $0x18] sm:$0xff]
        %v562 = vld [vmem:[#allocation3 + $0x20] sm:$0xff]
        %v563 = vld [vmem:[#allocation3 + $0x28] sm:$0xff]
        %v564 = vld [vmem:[#allocation3 + $0x30] sm:$0xff]
        %v565 = vld [vmem:[#allocation3 + $0x38] sm:$0xff]
        %v566 = vld [vmem:[%s1] sm:$0xff]
        %v567 = vld [vmem:[%s1 + $0x8] sm:$0xff]
        %v568 = vld [vmem:[%s1 + $0x10] sm:$0xff]
        %v569 = vld [vmem:[%s1 + $0x18] sm:$0xff]
        %v570 = vld [vmem:[%s1 + $0x20] sm:$0xff]
        %v571 = vld [vmem:[%s1 + $0x28] sm:$0xff]
        %v572 = vld [vmem:[%s1 + $0x30] sm:$0xff]
        %v573 = vld [vmem:[%s1 + $0x38] sm:$0xff]
        %vm574 = vcmask 523264
        %v576 = vsel %vm574, %v558, 0
        %v579 = vsel %vm574, %v559, 0
        %v582 = vsel %vm574, %v560, 0
        %v585 = vsel %vm574, %v561, 0
        %v588 = vsel %vm574, %v562, 0
        %v591 = vsel %vm574, %v563, 0
        %v594 = vsel %vm574, %v564, 0
        %v597 = vsel %vm574, %v565, 0
        %599 = vmatpush.msra.mxu0 0.0
        %600 = vmatpush.msra.mxu0 0.0
        %601 = vmatpush.msra.mxu0 0.0
        %602 = vmatpush.msra.mxu0 0.0
        %603 = vmatpush.msra.mxu0 0.0
        %604 = vmatpush.msra.mxu0 0.0
        %605 = vmatpush.msra.mxu0 0.0
        %606 = vmatpush.msra.mxu0 0.0
        %607 = vmatpush.msra.mxu0 %v573
        %608 = vmatpush.msra.mxu0 %v572
        %609 = vmatpush.msra.mxu0 %v571
        %610 = vmatpush.msra.mxu0 %v570
        %611 = vmatpush.msra.mxu0 %v569
        %612 = vmatpush.msra.mxu0 %v568
        %613 = vmatpush.msra.mxu0 %v567
        %614 = vmatpush.msra.mxu0 %v566
        %615 = vmatmul.f32.gmra.mxu0 %v576
        %v616 = vpop.f32.mrf.mxu0
        %v617 = vadd.f32 0.0, %v616
        %618 = vmatmul.f32.gmra.mxu0 %v579
        %v619 = vpop.f32.mrf.mxu0
        %v620 = vadd.f32 0.0, %v619
        %621 = vmatmul.f32.gmra.mxu0 %v582
        %v622 = vpop.f32.mrf.mxu0
        %v623 = vadd.f32 0.0, %v622
        %624 = vmatmul.f32.gmra.mxu0 %v585
        %v625 = vpop.f32.mrf.mxu0
        %v626 = vadd.f32 0.0, %v625
        %627 = vmatmul.f32.gmra.mxu0 %v588
        %v628 = vpop.f32.mrf.mxu0
        %v629 = vadd.f32 0.0, %v628
        %630 = vmatmul.f32.gmra.mxu0 %v591
        %v631 = vpop.f32.mrf.mxu0
        %v632 = vadd.f32 0.0, %v631
        %633 = vmatmul.f32.gmra.mxu0 %v594
        %v634 = vpop.f32.mrf.mxu0
        %v635 = vadd.f32 0.0, %v634
        %636 = vmatmul.f32.gmra.mxu0 %v597
        %v637 = vpop.f32.mrf.mxu0
        %v638 = vadd.f32 0.0, %v637
        %639 = vdwg.mxu0
        %v640 = vld [vmem:[%s2] sm:$0x1]
        %v642 = vperm.slane %v640, 0
        %v644 = vmul.f32 %v617, %v642
        %v645 = vmul.f32 %v620, %v642
        %v646 = vmul.f32 %v623, %v642
        %v647 = vmul.f32 %v626, %v642
        %v648 = vmul.f32 %v629, %v642
        %v649 = vmul.f32 %v632, %v642
        %v650 = vmul.f32 %v635, %v642
        %v651 = vmul.f32 %v638, %v642
        %v652 = vld [vmem:[%s3] sm:$0x1]
        %v654 = vperm.slane %v652, 0
        %v656 = vadd.f32 %v644, %v654
        %v657 = vadd.f32 %v645, %v654
        %v658 = vadd.f32 %v646, %v654
        %v659 = vadd.f32 %v647, %v654
        %v660 = vadd.f32 %v648, %v654
        %v661 = vadd.f32 %v649, %v654
        %v662 = vadd.f32 %v650, %v654
        %v663 = vadd.f32 %v651, %v654
        %v664 = vmax.f32 %v656, 0.0
        %v665 = vmax.f32 %v657, 0.0
        %v666 = vmax.f32 %v658, 0.0
        %v667 = vmax.f32 %v659, 0.0
        %v668 = vmax.f32 %v660, 0.0
        %v669 = vmax.f32 %v661, 0.0
        %v670 = vmax.f32 %v662, 0.0
        %v671 = vmax.f32 %v663, 0.0
        %vm672 = vcmask 64512
        %673 = vst.msk [vmem:[#allocation4] sm:$0xff] %vm672, 0.0
        %vm674 = vcmask 58368
        %675 = vst.msk [vmem:[#allocation4 + $0x8] sm:$0x3] %vm674, 0.0
        %676 = vst.msk [vmem:[#allocation4 + $0x10] sm:$0xff] %vm672, 0.0
        %677 = vst.msk [vmem:[#allocation4 + $0x18] sm:$0x3] %vm674, 0.0
        %678 = vst.msk [vmem:[#allocation4 + $0x20] sm:$0xff] %vm672, 0.0
        %679 = vst.msk [vmem:[#allocation4 + $0x28] sm:$0x3] %vm674, 0.0
        %680 = vst.msk [vmem:[#allocation4 + $0x30] sm:$0xff] %vm672, 0.0
        %681 = vst.msk [vmem:[#allocation4 + $0x38] sm:$0x3] %vm674, 0.0
        %682 = vst.msk [vmem:[#allocation4 + $0x40] sm:$0xff] %vm672, 0.0
        %683 = vst.msk [vmem:[#allocation4 + $0x48] sm:$0x3] %vm674, 0.0
        %684 = vst.msk [vmem:[#allocation4 + $0x50] sm:$0xff] %vm672, 0.0
        %685 = vst.msk [vmem:[#allocation4 + $0x58] sm:$0x3] %vm674, 0.0
        %686 = vst.msk [vmem:[#allocation4 + $0x60] sm:$0xff] %vm672, 0.0
        %687 = vst.msk [vmem:[#allocation4 + $0x68] sm:$0x3] %vm674, 0.0
        %688 = vst.msk [vmem:[#allocation4 + $0x70] sm:$0xff] %vm672, 0.0
        %689 = vst.msk [vmem:[#allocation4 + $0x78] sm:$0x3] %vm674, 0.0
        %690 = vst.msk [vmem:[#allocation4 + $0x80] sm:$0xff] %vm672, 0.0
        %691 = vst.msk [vmem:[#allocation4 + $0x88] sm:$0x3] %vm674, 0.0
        %692 = vst.msk [vmem:[#allocation4 + $0x90] sm:$0xff] %vm672, 0.0
        %693 = vst.msk [vmem:[#allocation4 + $0x98] sm:$0x3] %vm674, 0.0
        %s694 = scalar_lea.vmem [#allocation4], 16
        %695 = vst.msk [vmem:[%s694 + $0x1] sm:$0xff] %vm672, %v664
        %696 = vst.msk [vmem:[%s694 + $0x11] sm:$0xff] %vm672, %v665
        %697 = vst.msk [vmem:[%s694 + $0x21] sm:$0xff] %vm672, %v666
        %698 = vst.msk [vmem:[%s694 + $0x31] sm:$0xff] %vm672, %v667
        %699 = vst.msk [vmem:[%s694 + $0x41] sm:$0xff] %vm672, %v668
        %700 = vst.msk [vmem:[%s694 + $0x51] sm:$0xff] %vm672, %v669
        %701 = vst.msk [vmem:[%s694 + $0x61] sm:$0xff] %vm672, %v670
        %702 = vst.msk [vmem:[%s694 + $0x71] sm:$0xff] %vm672, %v671
        %v703 = vld [vmem:[#allocation4] sm:$0xff]
        %v704 = vld [vmem:[#allocation4 + $0x10] sm:$0xff]
        %v705 = vld [vmem:[#allocation4 + $0x20] sm:$0xff]
        %v706 = vld [vmem:[#allocation4 + $0x30] sm:$0xff]
        %v707 = vld [vmem:[#allocation4 + $0x40] sm:$0xff]
        %v708 = vld [vmem:[#allocation4 + $0x50] sm:$0xff]
        %v709 = vld [vmem:[#allocation4 + $0x60] sm:$0xff]
        %v710 = vld [vmem:[#allocation4 + $0x70] sm:$0xff]
        %711 = vst.msk [vmem:[#allocation5] sm:$0xff] %vm672, %v703
        %712 = vst.msk [vmem:[#allocation5 + $0x8] sm:$0xff] %vm672, %v704
        %713 = vst.msk [vmem:[#allocation5 + $0x10] sm:$0xff] %vm672, %v705
        %714 = vst.msk [vmem:[#allocation5 + $0x18] sm:$0xff] %vm672, %v706
        %715 = vst.msk [vmem:[#allocation5 + $0x20] sm:$0xff] %vm672, %v707
        %716 = vst.msk [vmem:[#allocation5 + $0x28] sm:$0xff] %vm672, %v708
        %717 = vst.msk [vmem:[#allocation5 + $0x30] sm:$0xff] %vm672, %v709
        %718 = vst.msk [vmem:[#allocation5 + $0x38] sm:$0xff] %vm672, %v710
        %v719 = vld [vmem:[#allocation4 + $0x1] sm:$0xff]
        %v720 = vld [vmem:[#allocation4 + $0x11] sm:$0xff]
        %v721 = vld [vmem:[#allocation4 + $0x21] sm:$0xff]
        %v722 = vld [vmem:[#allocation4 + $0x31] sm:$0xff]
        %v723 = vld [vmem:[#allocation4 + $0x41] sm:$0xff]
        %v724 = vld [vmem:[#allocation4 + $0x51] sm:$0xff]
        %v725 = vld [vmem:[#allocation4 + $0x61] sm:$0xff]
        %v726 = vld [vmem:[#allocation4 + $0x71] sm:$0xff]
        %735 = vrot.lane.b32.xlu0 %v719, 8
        %v736 = vpop.permute.xlu0 %735
        %737 = vrot.lane.b32.xlu0 %v720, 8
        %v738 = vpop.permute.xlu0 %737
        %739 = vrot.lane.b32.xlu0 %v721, 8
        %v740 = vpop.permute.xlu0 %739
        %741 = vrot.lane.b32.xlu0 %v722, 8
        %v742 = vpop.permute.xlu0 %741
        %743 = vrot.lane.b32.xlu0 %v723, 8
        %v744 = vpop.permute.xlu0 %743
        %745 = vrot.lane.b32.xlu0 %v724, 8
        %v746 = vpop.permute.xlu0 %745
        %747 = vrot.lane.b32.xlu0 %v725, 8
        %v748 = vpop.permute.xlu0 %747
        %749 = vrot.lane.b32.xlu0 %v726, 8
        %v750 = vpop.permute.xlu0 %749
        %vm759 = vcmask 130112
        %760 = vst.msk [vmem:[#allocation5] sm:$0xff] %vm759, %v736
        %761 = vst.msk [vmem:[#allocation5 + $0x8] sm:$0xff] %vm759, %v738
        %762 = vst.msk [vmem:[#allocation5 + $0x10] sm:$0xff] %vm759, %v740
        %763 = vst.msk [vmem:[#allocation5 + $0x18] sm:$0xff] %vm759, %v742
        %764 = vst.msk [vmem:[#allocation5 + $0x20] sm:$0xff] %vm759, %v744
        %765 = vst.msk [vmem:[#allocation5 + $0x28] sm:$0xff] %vm759, %v746
        %766 = vst.msk [vmem:[#allocation5 + $0x30] sm:$0xff] %vm759, %v748
        %767 = vst.msk [vmem:[#allocation5 + $0x38] sm:$0xff] %vm759, %v750
        %v768 = vld [vmem:[#allocation4 + $0x2] sm:$0xff]
        %v769 = vld [vmem:[#allocation4 + $0x12] sm:$0xff]
        %v770 = vld [vmem:[#allocation4 + $0x22] sm:$0xff]
        %v771 = vld [vmem:[#allocation4 + $0x32] sm:$0xff]
        %v772 = vld [vmem:[#allocation4 + $0x42] sm:$0xff]
        %v773 = vld [vmem:[#allocation4 + $0x52] sm:$0xff]
        %v774 = vld [vmem:[#allocation4 + $0x62] sm:$0xff]
        %v775 = vld [vmem:[#allocation4 + $0x72] sm:$0xff]
        %784 = vrot.lane.b32.xlu0 %v768, 16
        %v785 = vpop.permute.xlu0 %784
        %786 = vrot.lane.b32.xlu0 %v769, 16
        %v787 = vpop.permute.xlu0 %786
        %788 = vrot.lane.b32.xlu0 %v770, 16
        %v789 = vpop.permute.xlu0 %788
        %790 = vrot.lane.b32.xlu0 %v771, 16
        %v791 = vpop.permute.xlu0 %790
        %792 = vrot.lane.b32.xlu0 %v772, 16
        %v793 = vpop.permute.xlu0 %792
        %794 = vrot.lane.b32.xlu0 %v773, 16
        %v795 = vpop.permute.xlu0 %794
        %796 = vrot.lane.b32.xlu0 %v774, 16
        %v797 = vpop.permute.xlu0 %796
        %798 = vrot.lane.b32.xlu0 %v775, 16
        %v799 = vpop.permute.xlu0 %798
        %vm808 = vcmask 195712
        %809 = vst.msk [vmem:[#allocation5] sm:$0xff] %vm808, %v785
        %810 = vst.msk [vmem:[#allocation5 + $0x8] sm:$0xff] %vm808, %v787
        %811 = vst.msk [vmem:[#allocation5 + $0x10] sm:$0xff] %vm808, %v789
        %812 = vst.msk [vmem:[#allocation5 + $0x18] sm:$0xff] %vm808, %v791
        %813 = vst.msk [vmem:[#allocation5 + $0x20] sm:$0xff] %vm808, %v793
        %814 = vst.msk [vmem:[#allocation5 + $0x28] sm:$0xff] %vm808, %v795
        %815 = vst.msk [vmem:[#allocation5 + $0x30] sm:$0xff] %vm808, %v797
        %816 = vst.msk [vmem:[#allocation5 + $0x38] sm:$0xff] %vm808, %v799
        %v817 = vld [vmem:[%s694] sm:$0xff]
        %v818 = vld [vmem:[%s694 + $0x10] sm:$0xff]
        %v819 = vld [vmem:[%s694 + $0x20] sm:$0xff]
        %v820 = vld [vmem:[%s694 + $0x30] sm:$0xff]
        %v821 = vld [vmem:[%s694 + $0x40] sm:$0xff]
        %v822 = vld [vmem:[%s694 + $0x50] sm:$0xff]
        %v823 = vld [vmem:[%s694 + $0x60] sm:$0xff]
        %v824 = vld [vmem:[%s694 + $0x70] sm:$0xff]
        %833 = vrot.lane.b32.xlu0 %v817, 24
        %v834 = vpop.permute.xlu0 %833
        %835 = vrot.lane.b32.xlu0 %v818, 24
        %v836 = vpop.permute.xlu0 %835
        %837 = vrot.lane.b32.xlu0 %v819, 24
        %v838 = vpop.permute.xlu0 %837
        %839 = vrot.lane.b32.xlu0 %v820, 24
        %v840 = vpop.permute.xlu0 %839
        %841 = vrot.lane.b32.xlu0 %v821, 24
        %v842 = vpop.permute.xlu0 %841
        %843 = vrot.lane.b32.xlu0 %v822, 24
        %v844 = vpop.permute.xlu0 %843
        %845 = vrot.lane.b32.xlu0 %v823, 24
        %v846 = vpop.permute.xlu0 %845
        %847 = vrot.lane.b32.xlu0 %v824, 24
        %v848 = vpop.permute.xlu0 %847
        %vm857 = vcmask 261312
        %858 = vst.msk [vmem:[#allocation5] sm:$0xff] %vm857, %v834
        %859 = vst.msk [vmem:[#allocation5 + $0x8] sm:$0xff] %vm857, %v836
        %860 = vst.msk [vmem:[#allocation5 + $0x10] sm:$0xff] %vm857, %v838
        %861 = vst.msk [vmem:[#allocation5 + $0x18] sm:$0xff] %vm857, %v840
        %862 = vst.msk [vmem:[#allocation5 + $0x20] sm:$0xff] %vm857, %v842
        %863 = vst.msk [vmem:[#allocation5 + $0x28] sm:$0xff] %vm857, %v844
        %864 = vst.msk [vmem:[#allocation5 + $0x30] sm:$0xff] %vm857, %v846
        %865 = vst.msk [vmem:[#allocation5 + $0x38] sm:$0xff] %vm857, %v848
        %v866 = vld [vmem:[%s694 + $0x1] sm:$0xff]
        %v867 = vld [vmem:[%s694 + $0x11] sm:$0xff]
        %v868 = vld [vmem:[%s694 + $0x21] sm:$0xff]
        %v869 = vld [vmem:[%s694 + $0x31] sm:$0xff]
        %v870 = vld [vmem:[%s694 + $0x41] sm:$0xff]
        %v871 = vld [vmem:[%s694 + $0x51] sm:$0xff]
        %v872 = vld [vmem:[%s694 + $0x61] sm:$0xff]
        %v873 = vld [vmem:[%s694 + $0x71] sm:$0xff]
        %882 = vrot.lane.b32.xlu0 %v866, 32
        %v883 = vpop.permute.xlu0 %882
        %884 = vrot.lane.b32.xlu0 %v867, 32
        %v885 = vpop.permute.xlu0 %884
        %886 = vrot.lane.b32.xlu0 %v868, 32
        %v887 = vpop.permute.xlu0 %886
        %888 = vrot.lane.b32.xlu0 %v869, 32
        %v889 = vpop.permute.xlu0 %888
        %890 = vrot.lane.b32.xlu0 %v870, 32
        %v891 = vpop.permute.xlu0 %890
        %892 = vrot.lane.b32.xlu0 %v871, 32
        %v893 = vpop.permute.xlu0 %892
        %894 = vrot.lane.b32.xlu0 %v872, 32
        %v895 = vpop.permute.xlu0 %894
        %896 = vrot.lane.b32.xlu0 %v873, 32
        %v897 = vpop.permute.xlu0 %896
        %vm906 = vcmask 326912
        %907 = vst.msk [vmem:[#allocation5] sm:$0xff] %vm906, %v883
        %908 = vst.msk [vmem:[#allocation5 + $0x8] sm:$0xff] %vm906, %v885
        %909 = vst.msk [vmem:[#allocation5 + $0x10] sm:$0xff] %vm906, %v887
        %910 = vst.msk [vmem:[#allocation5 + $0x18] sm:$0xff] %vm906, %v889
        %911 = vst.msk [vmem:[#allocation5 + $0x20] sm:$0xff] %vm906, %v891
        %912 = vst.msk [vmem:[#allocation5 + $0x28] sm:$0xff] %vm906, %v893
        %913 = vst.msk [vmem:[#allocation5 + $0x30] sm:$0xff] %vm906, %v895
        %914 = vst.msk [vmem:[#allocation5 + $0x38] sm:$0xff] %vm906, %v897
        %v915 = vld [vmem:[%s694 + $0x2] sm:$0xff]
        %v916 = vld [vmem:[%s694 + $0x12] sm:$0xff]
        %v917 = vld [vmem:[%s694 + $0x22] sm:$0xff]
        %v918 = vld [vmem:[%s694 + $0x32] sm:$0xff]
        %v919 = vld [vmem:[%s694 + $0x42] sm:$0xff]
        %v920 = vld [vmem:[%s694 + $0x52] sm:$0xff]
        %v921 = vld [vmem:[%s694 + $0x62] sm:$0xff]
        %v922 = vld [vmem:[%s694 + $0x72] sm:$0xff]
        %931 = vrot.lane.b32.xlu0 %v915, 40
        %v932 = vpop.permute.xlu0 %931
        %933 = vrot.lane.b32.xlu0 %v916, 40
        %v934 = vpop.permute.xlu0 %933
        %935 = vrot.lane.b32.xlu0 %v917, 40
        %v936 = vpop.permute.xlu0 %935
        %937 = vrot.lane.b32.xlu0 %v918, 40
        %v938 = vpop.permute.xlu0 %937
        %939 = vrot.lane.b32.xlu0 %v919, 40
        %v940 = vpop.permute.xlu0 %939
        %941 = vrot.lane.b32.xlu0 %v920, 40
        %v942 = vpop.permute.xlu0 %941
        %943 = vrot.lane.b32.xlu0 %v921, 40
        %v944 = vpop.permute.xlu0 %943
        %945 = vrot.lane.b32.xlu0 %v922, 40
        %v946 = vpop.permute.xlu0 %945
        %vm955 = vcmask 392512
        %956 = vst.msk [vmem:[#allocation5] sm:$0xff] %vm955, %v932
        %957 = vst.msk [vmem:[#allocation5 + $0x8] sm:$0xff] %vm955, %v934
        %958 = vst.msk [vmem:[#allocation5 + $0x10] sm:$0xff] %vm955, %v936
        %959 = vst.msk [vmem:[#allocation5 + $0x18] sm:$0xff] %vm955, %v938
        %960 = vst.msk [vmem:[#allocation5 + $0x20] sm:$0xff] %vm955, %v940
        %961 = vst.msk [vmem:[#allocation5 + $0x28] sm:$0xff] %vm955, %v942
        %962 = vst.msk [vmem:[#allocation5 + $0x30] sm:$0xff] %vm955, %v944
        %963 = vst.msk [vmem:[#allocation5 + $0x38] sm:$0xff] %vm955, %v946
        %s964 = scalar_lea.vmem [#allocation4], 32
        %v965 = vld [vmem:[%s964] sm:$0xff]
        %v966 = vld [vmem:[%s964 + $0x10] sm:$0xff]
        %v967 = vld [vmem:[%s964 + $0x20] sm:$0xff]
        %v968 = vld [vmem:[%s964 + $0x30] sm:$0xff]
        %v969 = vld [vmem:[%s964 + $0x40] sm:$0xff]
        %v970 = vld [vmem:[%s964 + $0x50] sm:$0xff]
        %v971 = vld [vmem:[%s964 + $0x60] sm:$0xff]
        %v972 = vld [vmem:[%s964 + $0x70] sm:$0xff]
        %981 = vrot.lane.b32.xlu0 %v965, 48
        %v982 = vpop.permute.xlu0 %981
        %983 = vrot.lane.b32.xlu0 %v966, 48
        %v984 = vpop.permute.xlu0 %983
        %985 = vrot.lane.b32.xlu0 %v967, 48
        %v986 = vpop.permute.xlu0 %985
        %987 = vrot.lane.b32.xlu0 %v968, 48
        %v988 = vpop.permute.xlu0 %987
        %989 = vrot.lane.b32.xlu0 %v969, 48
        %v990 = vpop.permute.xlu0 %989
        %991 = vrot.lane.b32.xlu0 %v970, 48
        %v992 = vpop.permute.xlu0 %991
        %993 = vrot.lane.b32.xlu0 %v971, 48
        %v994 = vpop.permute.xlu0 %993
        %995 = vrot.lane.b32.xlu0 %v972, 48
        %v996 = vpop.permute.xlu0 %995
        %vm1005 = vcmask 458112
        %1006 = vst.msk [vmem:[#allocation5] sm:$0xff] %vm1005, %v982
        %1007 = vst.msk [vmem:[#allocation5 + $0x8] sm:$0xff] %vm1005, %v984
        %1008 = vst.msk [vmem:[#allocation5 + $0x10] sm:$0xff] %vm1005, %v986
        %1009 = vst.msk [vmem:[#allocation5 + $0x18] sm:$0xff] %vm1005, %v988
        %1010 = vst.msk [vmem:[#allocation5 + $0x20] sm:$0xff] %vm1005, %v990
        %1011 = vst.msk [vmem:[#allocation5 + $0x28] sm:$0xff] %vm1005, %v992
        %1012 = vst.msk [vmem:[#allocation5 + $0x30] sm:$0xff] %vm1005, %v994
        %1013 = vst.msk [vmem:[#allocation5 + $0x38] sm:$0xff] %vm1005, %v996
        %v1014 = vld [vmem:[%s964 + $0x1] sm:$0xff]
        %v1015 = vld [vmem:[%s964 + $0x11] sm:$0xff]
        %v1016 = vld [vmem:[%s964 + $0x21] sm:$0xff]
        %v1017 = vld [vmem:[%s964 + $0x31] sm:$0xff]
        %v1018 = vld [vmem:[%s964 + $0x41] sm:$0xff]
        %v1019 = vld [vmem:[%s964 + $0x51] sm:$0xff]
        %v1020 = vld [vmem:[%s964 + $0x61] sm:$0xff]
        %v1021 = vld [vmem:[%s964 + $0x71] sm:$0xff]
        %1030 = vrot.lane.b32.xlu0 %v1014, 56
        %v1031 = vpop.permute.xlu0 %1030
        %1032 = vrot.lane.b32.xlu0 %v1015, 56
        %v1033 = vpop.permute.xlu0 %1032
        %1034 = vrot.lane.b32.xlu0 %v1016, 56
        %v1035 = vpop.permute.xlu0 %1034
        %1036 = vrot.lane.b32.xlu0 %v1017, 56
        %v1037 = vpop.permute.xlu0 %1036
        %1038 = vrot.lane.b32.xlu0 %v1018, 56
        %v1039 = vpop.permute.xlu0 %1038
        %1040 = vrot.lane.b32.xlu0 %v1019, 56
        %v1041 = vpop.permute.xlu0 %1040
        %1042 = vrot.lane.b32.xlu0 %v1020, 56
        %v1043 = vpop.permute.xlu0 %1042
        %1044 = vrot.lane.b32.xlu0 %v1021, 56
        %v1045 = vpop.permute.xlu0 %1044
        %vm1054 = vcmask 523712
        %1055 = vst.msk [vmem:[#allocation5] sm:$0xff] %vm1054, %v1031
        %1056 = vst.msk [vmem:[#allocation5 + $0x8] sm:$0xff] %vm1054, %v1033
        %1057 = vst.msk [vmem:[#allocation5 + $0x10] sm:$0xff] %vm1054, %v1035
        %1058 = vst.msk [vmem:[#allocation5 + $0x18] sm:$0xff] %vm1054, %v1037
        %1059 = vst.msk [vmem:[#allocation5 + $0x20] sm:$0xff] %vm1054, %v1039
        %1060 = vst.msk [vmem:[#allocation5 + $0x28] sm:$0xff] %vm1054, %v1041
        %1061 = vst.msk [vmem:[#allocation5 + $0x30] sm:$0xff] %vm1054, %v1043
        %1062 = vst.msk [vmem:[#allocation5 + $0x38] sm:$0xff] %vm1054, %v1045
        %v1063 = vld [vmem:[%s964 + $0x2] sm:$0xff]
        %v1064 = vld [vmem:[%s964 + $0x12] sm:$0xff]
        %v1065 = vld [vmem:[%s964 + $0x22] sm:$0xff]
        %v1066 = vld [vmem:[%s964 + $0x32] sm:$0xff]
        %v1067 = vld [vmem:[%s964 + $0x42] sm:$0xff]
        %v1068 = vld [vmem:[%s964 + $0x52] sm:$0xff]
        %v1069 = vld [vmem:[%s964 + $0x62] sm:$0xff]
        %v1070 = vld [vmem:[%s964 + $0x72] sm:$0xff]
        %1079 = vrot.lane.b32.xlu0 %v1063, 64
        %v1080 = vpop.permute.xlu0 %1079
        %1081 = vrot.lane.b32.xlu0 %v1064, 64
        %v1082 = vpop.permute.xlu0 %1081
        %1083 = vrot.lane.b32.xlu0 %v1065, 64
        %v1084 = vpop.permute.xlu0 %1083
        %1085 = vrot.lane.b32.xlu0 %v1066, 64
        %v1086 = vpop.permute.xlu0 %1085
        %1087 = vrot.lane.b32.xlu0 %v1067, 64
        %v1088 = vpop.permute.xlu0 %1087
        %1089 = vrot.lane.b32.xlu0 %v1068, 64
        %v1090 = vpop.permute.xlu0 %1089
        %1091 = vrot.lane.b32.xlu0 %v1069, 64
        %v1092 = vpop.permute.xlu0 %1091
        %1093 = vrot.lane.b32.xlu0 %v1070, 64
        %v1094 = vpop.permute.xlu0 %1093
        %vm1103 = vcmask 589312
        %1104 = vst.msk [vmem:[#allocation5] sm:$0xff] %vm1103, %v1080
        %1105 = vst.msk [vmem:[#allocation5 + $0x8] sm:$0xff] %vm1103, %v1082
        %1106 = vst.msk [vmem:[#allocation5 + $0x10] sm:$0xff] %vm1103, %v1084
        %1107 = vst.msk [vmem:[#allocation5 + $0x18] sm:$0xff] %vm1103, %v1086
        %1108 = vst.msk [vmem:[#allocation5 + $0x20] sm:$0xff] %vm1103, %v1088
        %1109 = vst.msk [vmem:[#allocation5 + $0x28] sm:$0xff] %vm1103, %v1090
        %1110 = vst.msk [vmem:[#allocation5 + $0x30] sm:$0xff] %vm1103, %v1092
        %1111 = vst.msk [vmem:[#allocation5 + $0x38] sm:$0xff] %vm1103, %v1094
        %v1112 = vld [vmem:[#allocation5] sm:$0xff]
        %v1113 = vld [vmem:[#allocation5 + $0x8] sm:$0xff]
        %v1114 = vld [vmem:[#allocation5 + $0x10] sm:$0xff]
        %v1115 = vld [vmem:[#allocation5 + $0x18] sm:$0xff]
        %v1116 = vld [vmem:[#allocation5 + $0x20] sm:$0xff]
        %v1117 = vld [vmem:[#allocation5 + $0x28] sm:$0xff]
        %v1118 = vld [vmem:[#allocation5 + $0x30] sm:$0xff]
        %v1119 = vld [vmem:[#allocation5 + $0x38] sm:$0xff]
        %v1120 = vld [vmem:[%s4] sm:$0xff]
        %v1121 = vld [vmem:[%s4 + $0x8] sm:$0xff]
        %v1122 = vld [vmem:[%s4 + $0x10] sm:$0xff]
        %v1123 = vld [vmem:[%s4 + $0x18] sm:$0xff]
        %v1124 = vld [vmem:[%s4 + $0x20] sm:$0xff]
        %v1125 = vld [vmem:[%s4 + $0x28] sm:$0xff]
        %v1126 = vld [vmem:[%s4 + $0x30] sm:$0xff]
        %v1127 = vld [vmem:[%s4 + $0x38] sm:$0xff]
        %v1128 = vld [vmem:[%s4 + $0x40] sm:$0xff]
        %vm1129 = vcmask 588800
        %v1131 = vsel %vm1129, %v1112, 0
        %v1134 = vsel %vm1129, %v1113, 0
        %v1137 = vsel %vm1129, %v1114, 0
        %v1140 = vsel %vm1129, %v1115, 0
        %v1143 = vsel %vm1129, %v1116, 0
        %v1146 = vsel %vm1129, %v1117, 0
        %v1149 = vsel %vm1129, %v1118, 0
        %v1152 = vsel %vm1129, %v1119, 0
        %1154 = vmatpush.msra.mxu0 0.0
        %1155 = vmatpush.msra.mxu0 0.0
        %1156 = vmatpush.msra.mxu0 0.0
        %1157 = vmatpush.msra.mxu0 0.0
        %1158 = vmatpush.msra.mxu0 0.0
        %1159 = vmatpush.msra.mxu0 0.0
        %1160 = vmatpush.msra.mxu0 0.0
        %1161 = vmatpush.msra.mxu0 %v1128
        %1162 = vmatpush.msra.mxu0 %v1127
        %1163 = vmatpush.msra.mxu0 %v1126
        %1164 = vmatpush.msra.mxu0 %v1125
        %1165 = vmatpush.msra.mxu0 %v1124
        %1166 = vmatpush.msra.mxu0 %v1123
        %1167 = vmatpush.msra.mxu0 %v1122
        %1168 = vmatpush.msra.mxu0 %v1121
        %1169 = vmatpush.msra.mxu0 %v1120
        %1170 = vmatmul.f32.gmra.mxu0 %v1131
        %v1171 = vpop.f32.mrf.mxu0
        %v1172 = vadd.f32 0.0, %v1171
        %1173 = vmatmul.f32.gmra.mxu0 %v1134
        %v1174 = vpop.f32.mrf.mxu0
        %v1175 = vadd.f32 0.0, %v1174
        %1176 = vmatmul.f32.gmra.mxu0 %v1137
        %v1177 = vpop.f32.mrf.mxu0
        %v1178 = vadd.f32 0.0, %v1177
        %1179 = vmatmul.f32.gmra.mxu0 %v1140
        %v1180 = vpop.f32.mrf.mxu0
        %v1181 = vadd.f32 0.0, %v1180
        %1182 = vmatmul.f32.gmra.mxu0 %v1143
        %v1183 = vpop.f32.mrf.mxu0
        %v1184 = vadd.f32 0.0, %v1183
        %1185 = vmatmul.f32.gmra.mxu0 %v1146
        %v1186 = vpop.f32.mrf.mxu0
        %v1187 = vadd.f32 0.0, %v1186
        %1188 = vmatmul.f32.gmra.mxu0 %v1149
        %v1189 = vpop.f32.mrf.mxu0
        %v1190 = vadd.f32 0.0, %v1189
        %1191 = vmatmul.f32.gmra.mxu0 %v1152
        %v1192 = vpop.f32.mrf.mxu0
        %v1193 = vadd.f32 0.0, %v1192
        %1194 = vdwg.mxu0
        %v1195 = vld [vmem:[%s5] sm:$0x1]
        %v1197 = vperm.slane %v1195, 0
        %v1199 = vmul.f32 %v1172, %v1197
        %v1200 = vmul.f32 %v1175, %v1197
        %v1201 = vmul.f32 %v1178, %v1197
        %v1202 = vmul.f32 %v1181, %v1197
        %v1203 = vmul.f32 %v1184, %v1197
        %v1204 = vmul.f32 %v1187, %v1197
        %v1205 = vmul.f32 %v1190, %v1197
        %v1206 = vmul.f32 %v1193, %v1197
        %v1207 = vld [vmem:[%s6] sm:$0x1]
        %v1209 = vperm.slane %v1207, 0
        %v1211 = vadd.f32 %v1199, %v1209
        %v1212 = vadd.f32 %v1200, %v1209
        %v1213 = vadd.f32 %v1201, %v1209
        %v1214 = vadd.f32 %v1202, %v1209
        %v1215 = vadd.f32 %v1203, %v1209
        %v1216 = vadd.f32 %v1204, %v1209
        %v1217 = vadd.f32 %v1205, %v1209
        %v1218 = vadd.f32 %v1206, %v1209
        %v1219 = vld [vmem:[%s357] sm:$0xff]
        %v1220 = vld [vmem:[%s357 + $0x8] sm:$0xff]
        %v1221 = vld [vmem:[%s357 + $0x10] sm:$0xff]
        %v1222 = vld [vmem:[%s357 + $0x18] sm:$0xff]
        %v1223 = vld [vmem:[%s357 + $0x20] sm:$0xff]
        %v1224 = vld [vmem:[%s357 + $0x28] sm:$0xff]
        %v1225 = vld [vmem:[%s357 + $0x30] sm:$0xff]
        %v1226 = vld [vmem:[%s357 + $0x38] sm:$0xff]
        %v1227 = vld [vmem:[%s7] sm:$0xf]
        %vm1228 = vcmask 31744
        %v1230 = vsel %vm1228, %v1219, 0
        %v1233 = vsel %vm1228, %v1220, 0
        %v1236 = vsel %vm1228, %v1221, 0
        %v1239 = vsel %vm1228, %v1222, 0
        %v1242 = vsel %vm1228, %v1223, 0
        %v1245 = vsel %vm1228, %v1224, 0
        %v1248 = vsel %vm1228, %v1225, 0
        %v1251 = vsel %vm1228, %v1226, 0
        %vm1253 = vcmask 1043456
        %v1255 = vsel %vm1253, %v1227, 0
        %1257 = vmatpush.msra.mxu0 0.0
        %1258 = vmatpush.msra.mxu0 0.0
        %1259 = vmatpush.msra.mxu0 0.0
        %1260 = vmatpush.msra.mxu0 0.0
        %1261 = vmatpush.msra.mxu0 0.0
        %1262 = vmatpush.msra.mxu0 0.0
        %1263 = vmatpush.msra.mxu0 0.0
        %1264 = vmatpush.msra.mxu0 0.0
        %1265 = vmatpush.msra.mxu0 0.0
        %1266 = vmatpush.msra.mxu0 0.0
        %1267 = vmatpush.msra.mxu0 0.0
        %1268 = vmatpush.msra.mxu0 0.0
        %1269 = vmatpush.msra.mxu0 0.0
        %1270 = vmatpush.msra.mxu0 0.0
        %1271 = vmatpush.msra.mxu0 0.0
        %1272 = vmatpush.msra.mxu0 %v1255
        %1273 = vmatmul.f32.gmra.mxu0 %v1230
        %v1274 = vpop.f32.mrf.mxu0
        %v1275 = vadd.f32 0.0, %v1274
        %1276 = vmatmul.f32.gmra.mxu0 %v1233
        %v1277 = vpop.f32.mrf.mxu0
        %v1278 = vadd.f32 0.0, %v1277
        %1279 = vmatmul.f32.gmra.mxu0 %v1236
        %v1280 = vpop.f32.mrf.mxu0
        %v1281 = vadd.f32 0.0, %v1280
        %1282 = vmatmul.f32.gmra.mxu0 %v1239
        %v1283 = vpop.f32.mrf.mxu0
        %v1284 = vadd.f32 0.0, %v1283
        %1285 = vmatmul.f32.gmra.mxu0 %v1242
        %v1286 = vpop.f32.mrf.mxu0
        %v1287 = vadd.f32 0.0, %v1286
        %1288 = vmatmul.f32.gmra.mxu0 %v1245
        %v1289 = vpop.f32.mrf.mxu0
        %v1290 = vadd.f32 0.0, %v1289
        %1291 = vmatmul.f32.gmra.mxu0 %v1248
        %v1292 = vpop.f32.mrf.mxu0
        %v1293 = vadd.f32 0.0, %v1292
        %1294 = vmatmul.f32.gmra.mxu0 %v1251
        %v1295 = vpop.f32.mrf.mxu0
        %v1296 = vadd.f32 0.0, %v1295
        %1297 = vdwg.mxu0
        %v1298 = vld [vmem:[%s8] sm:$0x1]
        %v1300 = vperm.slane %v1298, 0
        %v1302 = vmul.f32 %v1275, %v1300
        %v1303 = vmul.f32 %v1278, %v1300
        %v1304 = vmul.f32 %v1281, %v1300
        %v1305 = vmul.f32 %v1284, %v1300
        %v1306 = vmul.f32 %v1287, %v1300
        %v1307 = vmul.f32 %v1290, %v1300
        %v1308 = vmul.f32 %v1293, %v1300
        %v1309 = vmul.f32 %v1296, %v1300
        %v1310 = vld [vmem:[%s9] sm:$0x1]
        %v1312 = vperm.slane %v1310, 0
        %v1314 = vadd.f32 %v1302, %v1312
        %v1315 = vadd.f32 %v1303, %v1312
        %v1316 = vadd.f32 %v1304, %v1312
        %v1317 = vadd.f32 %v1305, %v1312
        %v1318 = vadd.f32 %v1306, %v1312
        %v1319 = vadd.f32 %v1307, %v1312
        %v1320 = vadd.f32 %v1308, %v1312
        %v1321 = vadd.f32 %v1309, %v1312
        %v1322 = vadd.f32 %v1211, %v1314
        %v1323 = vadd.f32 %v1212, %v1315
        %v1324 = vadd.f32 %v1213, %v1316
        %v1325 = vadd.f32 %v1214, %v1317
        %v1326 = vadd.f32 %v1215, %v1318
        %v1327 = vadd.f32 %v1216, %v1319
        %v1328 = vadd.f32 %v1217, %v1320
        %v1329 = vadd.f32 %v1218, %v1321
        %v1330 = vmax.f32 %v1322, 0.0
        %v1331 = vmax.f32 %v1323, 0.0
        %v1332 = vmax.f32 %v1324, 0.0
        %v1333 = vmax.f32 %v1325, 0.0
        %v1334 = vmax.f32 %v1326, 0.0
        %v1335 = vmax.f32 %v1327, 0.0
        %v1336 = vmax.f32 %v1328, 0.0
        %v1337 = vmax.f32 %v1329, 0.0
        %1338 = vst.msk [vmem:[%s352] sm:$0xff] %vm672, %v1330
        %1339 = vst.msk [vmem:[%s352 + $0x8] sm:$0xff] %vm672, %v1331
        %1340 = vst.msk [vmem:[%s352 + $0x10] sm:$0xff] %vm672, %v1332
        %1341 = vst.msk [vmem:[%s352 + $0x18] sm:$0xff] %vm672, %v1333
        %1342 = vst.msk [vmem:[%s352 + $0x20] sm:$0xff] %vm672, %v1334
        %1343 = vst.msk [vmem:[%s352 + $0x28] sm:$0xff] %vm672, %v1335
        %1344 = vst.msk [vmem:[%s352 + $0x30] sm:$0xff] %vm672, %v1336
        %1345 = vst.msk [vmem:[%s352 + $0x38] sm:$0xff] %vm672, %v1337
        %s1346 = sand.u32 %s247, 1
        %s1347 = scalar_lea.sflag [#allocation7], %s1346
        %s1348 = sand.u32 %s247, 1
        %s1349 = smul.addr %s1348, 64
        %s1350 = scalar_lea.vmem [#allocation6], %s1349
        // Predicated region
        $region61: #{tpu_custom_call.1} parent=59 // pred_check
          %p1351 = pneg %p257
        $region62: #{tpu_custom_call.1} parent=59 // pred_check_branch
          %1353 = sbr.rel (%p1351) target = $region64
        $region63: #{tpu_custom_call.1} parent=59 // pred_region
          %1355 = vsyncadd %s1347, 0
          %s1356 = smul.addr %s24, 8
          %s1357 = smul.addr %s1356, 8
          %s1358 = scalar_lea.hbm %s10, %s1357
          %s1359 = sshll.u32 %s1350, 4
          %s1360 = int_to_ptr.vmem [resolvable:$true] %s1359
          %s1361 = sshll.u32 %s1358, 4
          %s1362 = int_to_ptr.hbm [resolvable:$true] %s1361
          %1367 = dma.vmem_to_hbm [thread:$0]  %s1360, 1024, %s1362, %s1347, 128, 128, 8
        $region64: #{tpu_custom_call.1} parent=59 // pred_fallthru
          _
      $region60: #{tpu_custom_call.1} parent=5 // pred_fallthru
        _
      %p1368 = scmp.le.s32.totalorder 2, %s19
      // Predicated region
      $region65: #{tpu_custom_call.1} parent=5 // pred_check
        %p1369 = pneg %p1368
      $region66: #{tpu_custom_call.1} parent=5 // pred_check_branch
        %1371 = sbr.rel (%p1369) target = $region68
      $region67: #{tpu_custom_call.1} parent=5 // pred_region
        %s1372 = ssub.s32 %s19, 2
        // Predicated region
        $region69: #{tpu_custom_call.1} parent=67 // pred_check
          %p1373 = pneg %p263
        $region70: #{tpu_custom_call.1} parent=67 // pred_check_branch
          %1375 = sbr.rel (%p1373) target = $region72
        $region71: #{tpu_custom_call.1} parent=67 // pred_region
          %s1376 = sand.u32 %s248, 1
          %s1377 = scalar_lea.sflag [#allocation7], %s1376
          %s1378 = sand.u32 %s248, 1
          %s1379 = smul.addr %s1378, 64
          %s1380 = scalar_lea.vmem [#allocation6], %s1379
          %1382 = dma.done %s1377, 1024
        $region72: #{tpu_custom_call.1} parent=67 // pred_fallthru
          _
      $region68: #{tpu_custom_call.1} parent=5 // pred_fallthru
        _
    $region6: #{tpu_custom_call.1} parent=1 // loop_footer
      %s23 = sadd.s32 1, %s19
    $region7: #{tpu_custom_call.1} parent=1 // loop_footer_branch
      %18 = sbr.rel target = $region3
    $region8: #{tpu_custom_call.1} parent=1 // loop_exit
      _
    %1383 = vsyncpa [#allocation7], 1
    %s1384 = scalar_lea.sflag [#allocation7], 1
    %1385 = vsyncpa %s1384, 1

</llo_original>
